<compile_context>
chip_gen: v6e
topology: v6e:2x2x1
jax: 0.10.0
libtpu: 0.0.40
codegen_flags: <defaults>
</compile_context>

<pallas_src>
import functools

import jax
import jax.numpy as jnp
from jax.experimental import pallas as pl
from jax.experimental.pallas import tpu as pltpu


def _round_up(v, m):
    return (v + m - 1) // m * m


def _physical_vmem_bytes():
    # Generation-aware VMEM capacity (v5e/v6e: 128 MiB, v7x: 64 MiB).  Fall back
    # to the conservative 64 MiB if the query is unavailable.
    try:
        info = pltpu.get_tpu_info()
        vmem = int(getattr(info, "vmem_capacity_bytes", 0) or 0)
        if vmem > 0:
            return vmem
    except Exception:
        pass
    return 64 * 2 ** 20


def _nonlocal_kernel(x_ref, phiT_ref, g_ref,
                     tw_ref, tb_ref,      # theta (1/sqrt(Ci) folded): (Cp,Cip) attn, (1,Cip) f32
                     ww_ref, wb_ref,      # W conv with BN folded:     (Cip,Cp) attn, (1,Cp) f32
                     o_ref,
                     *, attn_dtype, exact):
    x = x_ref[0]                                                   # (TQ, Cp) f32
    # theta projection (1x1x1 conv == channel matmul) on the MXU in attn_dtype,
    # f32 accumulation; the 1/sqrt(Ci) scale is folded into tw/tb.
    theta = jnp.dot(x.astype(attn_dtype), tw_ref[...],
                    preferred_element_type=jnp.float32) + tb_ref[...]

    # attention scores: plain (TQ,Cip) @ (Cip,M) matmul, phi^T already transposed.
    f = jnp.dot(theta.astype(attn_dtype), phiT_ref[0],
                preferred_element_type=jnp.float32)                # (TQ, M) f32

    # numerically-stable softmax with deferred normalization.
    f = f - jnp.max(f, axis=-1, keepdims=True)
    if exact:
        p = jnp.exp(f)                                             # f32 exp (exact path)
    else:
        p = jnp.exp(f.astype(attn_dtype))                          # bf16 EUP exp; p already attn_dtype
    s = jnp.sum(p.astype(jnp.float32), axis=-1, keepdims=True)     # (TQ, 1) f32 rowsum

    y = jnp.dot(p, g_ref[0], preferred_element_type=jnp.float32)   # (TQ, Cip) f32
    y = y * pl.reciprocal(s, approx=not exact)

    # W projection (eval-mode BatchNorm affine folded in) + residual.
    wy = jnp.dot(y.astype(attn_dtype), ww_ref[...],
                 preferred_element_type=jnp.float32) + wb_ref[...]
    o_ref[0] = (wy + x).astype(o_ref.dtype)


def nonlocal_block(x, params, *, tq=512, attn_dtype=jnp.bfloat16):
    """NonLocalBlock forward (sub_sample=True, bn_layer=True, eval-mode BN).

    x: (b, C, T, H, W) float32 (NCTHW, PyTorch convention)."""
    b, C, T, H, W = x.shape
    assert H % 2 == 0 and W % 2 == 0, "MaxPool3d((1,2,2)) path assumes even H, W"
    # TODO(synk): odd H/W (MaxPool3d floor semantics) not handled; asserted even above.
    Ci = params["theta_w"].shape[1]
    N = T * H * W
    M = T * (H // 2) * (W // 2)

    Cp = _round_up(C, 128)
    Cip = _round_up(Ci, 128)
    exact = jnp.dtype(attn_dtype) == jnp.float32
    ad = jnp.dtype(attn_dtype).itemsize

    # ---- channels-last token slab; max-pool in channels-last so x is transposed
    # only once (one HBM pass of glue).
    x_cl = jnp.transpose(x, (0, 2, 3, 4, 1))                          # (b,T,H,W,C)
    x_flat = x_cl.reshape(b, N, C)
    xp_flat = jnp.max(x_cl.reshape(b, T, H // 2, 2, W // 2, 2, C),
                      axis=(3, 5)).reshape(b, M, C)                   # pooled tokens

    # ---- phi / g projected from the pooled tokens ONCE per batch in the wrapper
    # (tiny: M = N/4 tokens), then padded / transposed / cast to attn_dtype.
    # Passing them as per-batch inputs removes the in-kernel q==0 scratch init
    # and lets both grid axes be 'parallel'.
    phi = xp_flat @ params["phi_w"] + params["phi_b"]                 # (b, M, Ci) f32
    gv = xp_flat @ params["g_w"] + params["g_b"]                      # (b, M, Ci) f32
    phiT = jnp.swapaxes(phi, 1, 2)                                    # (b, Ci, M)
    if Cip != Ci:
        phiT = jnp.pad(phiT, ((0, 0), (0, Cip - Ci), (0, 0)))
        gv = jnp.pad(gv, ((0, 0), (0, 0), (0, Cip - Ci)))
    phiT = phiT.astype(attn_dtype)
    gv = gv.astype(attn_dtype)

    # zero-pad query channels to lane-dense multiples of 128; padded lanes stay
    # exactly zero end-to-end (padded weight/bias entries are zero).
    x_p = x_flat if Cp == C else jnp.pad(x_flat, ((0, 0), (0, 0), (0, Cp - C)))

    def pad2(a, r, c):
        pr, pc = r - a.shape[0], c - a.shape[1]
        return jnp.pad(a, ((0, pr), (0, pc))) if (pr or pc) else a

    inv = float(Ci) ** -0.5
    tw = pad2(params["theta_w"] * inv, Cp, Cip).astype(attn_dtype)    # scale folded
    tb = pad2(params["theta_b"] * inv, 1, Cip)                        # f32 bias
    # fold eval-mode BatchNorm affine into the W conv.
    ww = pad2(params["W_w"] * params["bn_scale"], Cip, Cp).astype(attn_dtype)
    wb = pad2(params["W_b"] * params["bn_scale"] + params["bn_shift"], 1, Cp)

    # ---- generation-aware VMEM budget & query-tile size.
    budget = int(_physical_vmem_bytes() * 0.8)   # headroom for Mosaic internal scratch

    def est(t):
        return (4 * t * Cp * 4                   # x + out tiles, double-buffered
                + 4 * M * Cip * ad               # phi^T + g blocks, double-buffered
                + 4 * Cp * Cip * ad              # theta + W weights, double-buffered
                + t * M * (4 + ad)               # f / p score temporaries
                + 3 * t * Cip * 4)               # theta / y temporaries

    tq = min(tq, N)
    while tq > 128 and est(tq) > budget * 0.6:
        tq = max(128, (tq // 2 + 7) // 8 * 8)
    if tq != N:
        tq = max(8, tq - tq % 8)
        # prefer a tile that divides N (avoids masked partial-tile overhang rows).
        cand = tq
        while cand >= 8 and N % cand != 0:
            cand -= 8
        if cand >= 8:
            tq = cand
        # else: fall back to a masked partial final tile (rows are independent,
        # overhang stores are masked, so this stays correct).
    n_tiles = pl.cdiv(N, tq)
    vmem_limit = int(min(max(2 * est(tq), 32 * 2 ** 20), budget))

    kernel = functools.partial(_nonlocal_kernel, attn_dtype=attn_dtype, exact=exact)

    def const_spec(shape):
        nd = len(shape)
        # TODO(synk): pipeline_mode=pl.Buffered(1) on these never-refetched weight
        # blocks would reclaim the duplicate buffer on 64 MiB (v7x) parts.
        return pl.BlockSpec(shape, lambda i, q, _nd=nd: (0,) * _nd)

    out_p = pl.pallas_call(
        kernel,
        out_shape=jax.ShapeDtypeStruct((b, N, Cp), x.dtype),
        grid_spec=pltpu.PrefetchScalarGridSpec(
            num_scalar_prefetch=0,
            grid=(b, n_tiles),
            in_specs=[
                pl.BlockSpec((1, tq, Cp), lambda i, q: (i, q, 0)),    # x query tile
                pl.BlockSpec((1, Cip, M), lambda i, q: (i, 0, 0)),    # phi^T (per batch)
                pl.BlockSpec((1, M, Cip), lambda i, q: (i, 0, 0)),    # g     (per batch)
                const_spec((Cp, Cip)), const_spec((1, Cip)),          # theta w/b
                const_spec((Cip, Cp)), const_spec((1, Cp)),           # W w/b (+BN folded)
            ],
            out_specs=pl.BlockSpec((1, tq, Cp), lambda i, q: (i, q, 0)),
        ),
        compiler_params=pltpu.CompilerParams(
            # No cross-grid-step state anymore: both axes can shard across cores.
            dimension_semantics=("parallel", "parallel"),
            vmem_limit_bytes=vmem_limit,
        ),
    )(x_p, phiT, gv, tw, tb, ww, wb)

    # Glue: drop channel padding (if any), back to NCTHW.
    out = out_p if Cp == C else out_p[:, :, :C]
    return out.reshape(b, T, H, W, C).transpose(0, 4, 1, 2, 3)


def nonlocal_ref(x, params):
    """Pure-JAX reference of the same forward pass (for verification)."""
    b, C, T, H, W = x.shape
    Ci = params["theta_w"].shape[1]
    x_flat = jnp.transpose(x, (0, 2, 3, 4, 1)).reshape(b, -1, C)
    xp = jnp.max(x.reshape(b, C, T, H // 2, 2, W // 2, 2), axis=(4, 6))
    xp_flat = jnp.transpose(xp, (0, 2, 3, 4, 1)).reshape(b, -1, C)
    theta = x_flat @ params["theta_w"] + params["theta_b"]
    phi = xp_flat @ params["phi_w"] + params["phi_b"]
    g = xp_flat @ params["g_w"] + params["g_b"]
    f = jnp.einsum("bnk,bmk->bnm", theta, phi) * (float(Ci) ** -0.5)
    p = jax.nn.softmax(f, axis=-1)
    y = jnp.einsum("bnm,bmk->bnk", p, g)
    wy = y @ params["W_w"] + params["W_b"]
    wy = wy * params["bn_scale"] + params["bn_shift"]
    z = wy + x_flat
    return z.reshape(b, T, H, W, C).transpose(0, 4, 1, 2, 3)


if __name__ == "__main__":
    b, C, T, H, W = 2, 8, 2, 16, 16        # in_channels=8 -> inter_channels=4
    Ci = C // 2                            # N = 512, M = 128

    key = jax.random.PRNGKey(0)
    keys = jax.random.split(key, 9)
    x = jax.random.normal(keys[0], (b, C, T, H, W), jnp.float32)

    def w(k, shape):
        return (jax.random.normal(k, shape, jnp.float32) * 0.1).astype(jnp.float32)

    params = {
        # conv weights stored as (in, out) for channels-last matmul (== conv3d 1x1x1)
        "theta_w": w(keys[1], (C, Ci)), "theta_b": w(keys[2], (1, Ci)),
        "phi_w":   w(keys[3], (C, Ci)), "phi_b":   w(keys[4], (1, Ci)),
        "g_w":     w(keys[5], (C, Ci)), "g_b":     w(keys[6], (1, Ci)),
        "W_w":     w(keys[7], (Ci, C)), "W_b":     w(keys[8], (1, C)),
        # BatchNorm3d init per module: weight=0, bias=0; eval-mode fold with
        # running_mean=0, running_var=1 -> scale=0, shift=0 (W_y contributes 0).
        "bn_scale": jnp.zeros((1, C), jnp.float32),
        "bn_shift": jnp.zeros((1, C), jnp.float32),
    }

    # f32 compute path: tight check vs. the JAX reference + exact identity at init.
    z = jax.block_until_ready(nonlocal_block(x, params, tq=128, attn_dtype=jnp.float32))
    z_ref = nonlocal_ref(x, params)
    assert jnp.allclose(z, z_ref, atol=1e-4, rtol=1e-4), "kernel != JAX reference"
    assert jnp.allclose(z, x, atol=1e-5), "expected identity at init (BN gamma=beta=0)"

    # Exercise the attention path (BN scale folded to 1): f32 and bf16 MXU paths,
    # both the tiled (tq=128) and single-tile (default tq) grids.
    p2 = dict(params, bn_scale=jnp.ones((1, C), jnp.float32))
    z2_ref = nonlocal_ref(x, p2)
    z2_f32 = jax.block_until_ready(nonlocal_block(x, p2, tq=128, attn_dtype=jnp.float32))
    assert jnp.allclose(z2_f32, z2_ref, atol=1e-4, rtol=1e-4), "f32 attention path mismatch"
    z2_bf16 = jax.block_until_ready(nonlocal_block(x, p2, attn_dtype=jnp.bfloat16))
    assert jnp.allclose(z2_bf16, z2_ref, atol=2e-2, rtol=2e-2), "bf16 attention path mismatch"
    z3_bf16 = jax.block_until_ready(nonlocal_block(x, p2, tq=128, attn_dtype=jnp.bfloat16))
    assert jnp.allclose(z3_bf16, z2_ref, atol=2e-2, rtol=2e-2), "bf16 tiled path mismatch"

    print("KERNEL_OK")
</pallas_src>

<mosaic_0001>
module attributes {stable_mosaic.version = 11 : i64} {
  func.func @_nonlocal_kernel(%arg0: i32, %arg1: i32, %arg2: memref<1x128x128xf32, #tpu.memory_space<vmem>>, %arg3: memref<1x128x128xf32, #tpu.memory_space<vmem>>, %arg4: memref<1x128x128xf32, #tpu.memory_space<vmem>>, %arg5: memref<128x128xf32, #tpu.memory_space<vmem>>, %arg6: memref<1x128xf32, #tpu.memory_space<vmem>>, %arg7: memref<128x128xf32, #tpu.memory_space<vmem>>, %arg8: memref<1x128xf32, #tpu.memory_space<vmem>>, %arg9: memref<1x128x128xf32, #tpu.memory_space<vmem>>) attributes {dimension_semantics = [#tpu.dimension_semantics<parallel>, #tpu.dimension_semantics<parallel>], iteration_bounds = array<i64: 2, 4>, scalar_prefetch = 0 : i64, scratch_operands = 0 : i64, tpu.core_type = #tpu.core_type<tc>, window_params = [{transform_indices = @transform_0, window_bounds = array<i64: 1, 128, 128>}, {transform_indices = @transform_1, window_bounds = array<i64: 1, 128, 128>}, {transform_indices = @transform_2, window_bounds = array<i64: 1, 128, 128>}, {pipeline_mode = #tpu.pipeline_mode<synchronous>, transform_indices = @transform_3, window_bounds = array<i64: 128, 128>}, {pipeline_mode = #tpu.pipeline_mode<synchronous>, transform_indices = @transform_4, window_bounds = array<i64: 1, 128>}, {pipeline_mode = #tpu.pipeline_mode<synchronous>, transform_indices = @transform_5, window_bounds = array<i64: 128, 128>}, {pipeline_mode = #tpu.pipeline_mode<synchronous>, transform_indices = @transform_6, window_bounds = array<i64: 1, 128>}, {transform_indices = @transform_7, window_bounds = array<i64: 1, 128, 128>}]} {
    %c0 = arith.constant 0 : index
    %c0_0 = arith.constant 0 : index
    %c0_1 = arith.constant 0 : index
    %0 = vector.load %arg2[%c0, %c0_0, %c0_1] : memref<1x128x128xf32, #tpu.memory_space<vmem>>, vector<1x128x128xf32>
    %1 = vector.shape_cast %0 : vector<1x128x128xf32> to vector<128x128xf32>
    %c0_2 = arith.constant 0 : index
    %c0_3 = arith.constant 0 : index
    %2 = vector.load %arg5[%c0_2, %c0_3] : memref<128x128xf32, #tpu.memory_space<vmem>>, vector<128x128xf32>
    %cst = arith.constant dense<0.000000e+00> : vector<128x128xf32>
    %3 = tpu.matmul %1, %2, %cst {dimension_numbers = #tpu.dot_dimension_numbers<[1], [0], [0], [1], [0, 0, 1, 1], [], []>} : vector<128x128xf32>, vector<128x128xf32>, vector<128x128xf32> -> vector<128x128xf32>
    %c0_4 = arith.constant 0 : index
    %c0_5 = arith.constant 0 : index
    %4 = vector.load %arg6[%c0_4, %c0_5] : memref<1x128xf32, #tpu.memory_space<vmem>>, vector<1x128xf32>
    %5 = vector.broadcast %4 : vector<1x128xf32> to vector<128x128xf32>
    %6 = arith.addf %3, %5 : vector<128x128xf32>
    %c0_6 = arith.constant 0 : index
    %c0_7 = arith.constant 0 : index
    %c0_8 = arith.constant 0 : index
    %7 = vector.load %arg3[%c0_6, %c0_7, %c0_8] : memref<1x128x128xf32, #tpu.memory_space<vmem>>, vector<1x128x128xf32>
    %8 = vector.shape_cast %7 : vector<1x128x128xf32> to vector<128x128xf32>
    %cst_9 = arith.constant dense<0.000000e+00> : vector<128x128xf32>
    %9 = tpu.matmul %6, %8, %cst_9 {dimension_numbers = #tpu.dot_dimension_numbers<[1], [0], [0], [1], [0, 0, 1, 1], [], []>} : vector<128x128xf32>, vector<128x128xf32>, vector<128x128xf32> -> vector<128x128xf32>
    %cst_10 = arith.constant dense<0xFF800000> : vector<128xf32>
    %10 = vector.multi_reduction <maximumf>, %9, %cst_10 [1] : vector<128x128xf32> to vector<128xf32>
    %11 = vector.shape_cast %10 : vector<128xf32> to vector<128x1xf32>
    %12 = vector.broadcast %11 : vector<128x1xf32> to vector<128x128xf32>
    %13 = arith.subf %9, %12 : vector<128x128xf32>
    %14 = math.exp %13 : vector<128x128xf32>
    %cst_11 = arith.constant dense<0.000000e+00> : vector<128xf32>
    %15 = vector.multi_reduction <add>, %14, %cst_11 [1] : vector<128x128xf32> to vector<128xf32>
    %16 = vector.shape_cast %15 : vector<128xf32> to vector<128x1xf32>
    %c0_12 = arith.constant 0 : index
    %c0_13 = arith.constant 0 : index
    %c0_14 = arith.constant 0 : index
    %17 = vector.load %arg4[%c0_12, %c0_13, %c0_14] : memref<1x128x128xf32, #tpu.memory_space<vmem>>, vector<1x128x128xf32>
    %18 = vector.shape_cast %17 : vector<1x128x128xf32> to vector<128x128xf32>
    %cst_15 = arith.constant dense<0.000000e+00> : vector<128x128xf32>
    %19 = tpu.matmul %14, %18, %cst_15 {dimension_numbers = #tpu.dot_dimension_numbers<[1], [0], [0], [1], [0, 0, 1, 1], [], []>} : vector<128x128xf32>, vector<128x128xf32>, vector<128x128xf32> -> vector<128x128xf32>
    %20 = tpu.reciprocal %16 : vector<128x1xf32> -> vector<128x1xf32>
    %21 = vector.broadcast %20 : vector<128x1xf32> to vector<128x128xf32>
    %22 = arith.mulf %19, %21 : vector<128x128xf32>
    %c0_16 = arith.constant 0 : index
    %c0_17 = arith.constant 0 : index
    %23 = vector.load %arg7[%c0_16, %c0_17] : memref<128x128xf32, #tpu.memory_space<vmem>>, vector<128x128xf32>
    %cst_18 = arith.constant dense<0.000000e+00> : vector<128x128xf32>
    %24 = tpu.matmul %22, %23, %cst_18 {dimension_numbers = #tpu.dot_dimension_numbers<[1], [0], [0], [1], [0, 0, 1, 1], [], []>} : vector<128x128xf32>, vector<128x128xf32>, vector<128x128xf32> -> vector<128x128xf32>
    %c0_19 = arith.constant 0 : index
    %c0_20 = arith.constant 0 : index
    %25 = vector.load %arg8[%c0_19, %c0_20] : memref<1x128xf32, #tpu.memory_space<vmem>>, vector<1x128xf32>
    %26 = vector.broadcast %25 : vector<1x128xf32> to vector<128x128xf32>
    %27 = arith.addf %24, %26 : vector<128x128xf32>
    %28 = arith.addf %27, %1 : vector<128x128xf32>
    %c0_21 = arith.constant 0 : index
    %c0_22 = arith.constant 0 : index
    %c0_23 = arith.constant 0 : index
    %29 = vector.load %arg9[%c0_21, %c0_22, %c0_23] : memref<1x128x128xf32, #tpu.memory_space<vmem>>, vector<1x128x128xf32>
    %30 = vector.shape_cast %29 : vector<1x128x128xf32> to vector<128x128xf32>
    %31 = vector.shape_cast %28 : vector<128x128xf32> to vector<1x128x128xf32>
    tpu.vector_store %arg9[%c0_21, %c0_22, %c0_23], %31 {strides = array<i32>} : memref<1x128x128xf32, #tpu.memory_space<vmem>>, vector<1x128x128xf32>,
    return
  }
  func.func @transform_0(%arg0: i32, %arg1: i32) -> (i32, i32, i32) {
    %c0_i32 = arith.constant 0 : i32
    %c0_i32_0 = arith.constant 0 : i32
    return %arg0, %arg1, %c0_i32 : i32, i32, i32
  }
  func.func @transform_1(%arg0: i32, %arg1: i32) -> (i32, i32, i32) {
    %c0_i32 = arith.constant 0 : i32
    %c0_i32_0 = arith.constant 0 : i32
    %c0_i32_1 = arith.constant 0 : i32
    return %arg0, %c0_i32, %c0_i32_0 : i32, i32, i32
  }
  func.func @transform_2(%arg0: i32, %arg1: i32) -> (i32, i32, i32) {
    %c0_i32 = arith.constant 0 : i32
    %c0_i32_0 = arith.constant 0 : i32
    %c0_i32_1 = arith.constant 0 : i32
    return %arg0, %c0_i32, %c0_i32_0 : i32, i32, i32
  }
  func.func @transform_3(%arg0: i32, %arg1: i32) -> (i32, i32) {
    %c0_i32 = arith.constant 0 : i32
    %c0_i32_0 = arith.constant 0 : i32
    %c0_i32_1 = arith.constant 0 : i32
    return %c0_i32, %c0_i32_0 : i32, i32
  }
  func.func @transform_4(%arg0: i32, %arg1: i32) -> (i32, i32) {
    %c0_i32 = arith.constant 0 : i32
    %c0_i32_0 = arith.constant 0 : i32
    %c0_i32_1 = arith.constant 0 : i32
    return %c0_i32, %c0_i32_0 : i32, i32
  }
  func.func @transform_5(%arg0: i32, %arg1: i32) -> (i32, i32) {
    %c0_i32 = arith.constant 0 : i32
    %c0_i32_0 = arith.constant 0 : i32
    %c0_i32_1 = arith.constant 0 : i32
    return %c0_i32, %c0_i32_0 : i32, i32
  }
  func.func @transform_6(%arg0: i32, %arg1: i32) -> (i32, i32) {
    %c0_i32 = arith.constant 0 : i32
    %c0_i32_0 = arith.constant 0 : i32
    %c0_i32_1 = arith.constant 0 : i32
    return %c0_i32, %c0_i32_0 : i32, i32
  }
  func.func @transform_7(%arg0: i32, %arg1: i32) -> (i32, i32, i32) {
    %c0_i32 = arith.constant 0 : i32
    %c0_i32_0 = arith.constant 0 : i32
    return %arg0, %arg1, %c0_i32 : i32, i32, i32
  }
}

</mosaic_0001>

<llo_original>
// kernel: tpu_custom_call.1
$region0: #{tpu_custom_call.1}
  #allocation0 [shape = 'u32[]', space=smem, size = 0x4, offset = 0x4, fixed_abs, tag = 'smem constant byte address 0x4 - core index']
  #allocation1 [shape = 'u32[144,128]{1,0:T(1,128)}', space=vmem, size = 0x12000, scoped, tag = 'internal scratch']
  %s0 = inlined_call_operand.hbm [shape: f32[2,512,128], index: 0, kind: input, shape index: {}]
  %s1 = inlined_call_operand.hbm [shape: f32[2,128,128], index: 1, kind: input, shape index: {}]
  %s2 = inlined_call_operand.hbm [shape: f32[2,128,128], index: 2, kind: input, shape index: {}]
  %s3 = inlined_call_operand.hbm [shape: f32[128,128], index: 3, kind: input, shape index: {}]
  %s4 = inlined_call_operand.vmem [shape: f32[1,128], index: 4, kind: input, shape index: {}]
  %s5 = inlined_call_operand.hbm [shape: f32[128,128], index: 5, kind: input, shape index: {}]
  %s6 = inlined_call_operand.vmem [shape: f32[1,128], index: 6, kind: input, shape index: {}]
  %s7 = inlined_call_operand.hbm [shape: f32[2,512,128], index: 7, kind: output, shape index: {}]
  %s8 = sld [smem:[#allocation0]]
  $region81: #{tpu_custom_call.1} parent=0
    _
  %s10 = ssub.s32 1, %s8
  %s11 = scalar_select 0, %s10, %s8
  $region1: #{tpu_custom_call.1} parent=0
    #allocation2 [shape = 'u8[131072]{0}', space=vmem, size = 0x20000, scoped, tag = 'input window, operand 0']
    #allocation3 [shape = 's32[2]{0}', space=sflag, size = 0x8, scoped, tag = 'scoped memory for tpu_custom_call.1']
    #allocation4 [shape = 's32[2]{0}', space=sflag, size = 0x8, scoped, tag = 'scoped memory for tpu_custom_call.1']
    #allocation5 [shape = 'u8[131072]{0}', space=vmem, size = 0x20000, scoped, tag = 'input window, operand 1']
    #allocation6 [shape = 's32[2]{0}', space=sflag, size = 0x8, scoped, tag = 'scoped memory for tpu_custom_call.1']
    #allocation7 [shape = 'u8[131072]{0}', space=vmem, size = 0x20000, scoped, tag = 'input window, operand 2']
    #allocation8 [shape = 'u8[65536]{0}', space=vmem, size = 0x10000, scoped, tag = 'input window, operand 3, single buffered']
    #allocation9 [shape = 's32[1]{0}', space=sflag, size = 0x4, scoped, tag = 'scoped memory for tpu_custom_call.1']
    #allocation10 [shape = 'u8[65536]{0}', space=vmem, size = 0x10000, scoped, tag = 'input window, operand 5, single buffered']
    #allocation11 [shape = 'u8[131072]{0}', space=vmem, size = 0x20000, scoped, tag = 'output window, operand 0']
    %12 = vsyncpa [#allocation3], 0
    %s13 = scalar_lea.sflag [#allocation3], 1
    %14 = vsyncpa %s13, 0
    %15 = vsyncpa [#allocation6], 0
    %s16 = scalar_lea.sflag [#allocation6], 1
    %17 = vsyncpa %s16, 0
    %18 = vsyncpa [#allocation9], 0
    %19 = vsyncpa [#allocation4], 0
    %s20 = scalar_lea.sflag [#allocation4], 1
    %21 = vsyncpa %s20, 0
    loop: start=0, step=1, limit=10
    $region2: #{tpu_custom_call.1} parent=1 // loop_pre_header
      _
    $region3: #{tpu_custom_call.1} parent=1 // loop_header
      %s23 = sphi 0, %s27
      %p24 = scmp.ge.s32.totalorder %s23, 10
      %s30 = sphi 0, %s42
      %s31 = sphi 0, %s38
      %s32 = sphi 0, %s30
      %s33 = sphi 0, %s31
      %s34 = sphi 0, %s32
      %s35 = sphi 0, %s33
      %s47 = sphi 0, %s49
      %s50 = sphi 0, %s47
      %s51 = sphi 0, %s50
      %s67 = sphi 0, %s51
      %s73 = sphi 0, %s75
      %s76 = sphi 0, %s73
      %s77 = sphi 0, %s76
      %s93 = sphi 0, %s77
      %s99 = sphi 0, %s101
      %s102 = sphi 0, %s99
      %s103 = sphi 0, %s102
      %s119 = sphi 0, %s103
      %s123 = sphi 0, %s123
      %s125 = sphi 0, %s123
      %s126 = sphi 0, %s125
      %s140 = sphi 0, %s126
      %s144 = sphi 0, %s144
      %s146 = sphi 0, %s144
      %s147 = sphi 0, %s146
      %s161 = sphi 0, %s147
      %s165 = sphi 0, %s165
      %s167 = sphi 0, %s165
      %s168 = sphi 0, %s167
      %s182 = sphi 0, %s168
      %s186 = sphi 0, %s186
      %s188 = sphi 0, %s186
      %s189 = sphi 0, %s188
      %s203 = sphi 0, %s189
      %s211 = sphi 0, %s213
      %s214 = sphi 0, %s211
      %s215 = sphi 0, %s214
      %s231 = sphi 0, %s215
    $region4: #{tpu_custom_call.1} parent=1 // loop_header_branch
      %26 = sbr.rel (%p24) target = $region8
    $region5: #{tpu_custom_call.1} parent=1 // loop_body
      %s28 = ssub.s32 %s23, 1
      %s29 = ssub.s32 %s23, 2
      %s36 = sadd.s32 1, %s31
      %p37 = scmp.ge.s32.totalorder %s36, 4
      %s38 = scalar_select %p37, 0, %s36
      %s39 = sadd.s32 1, %s30
      %s40 = scalar_select %p37, %s39, %s30
      %p41 = scmp.ge.s32.totalorder %s40, 2
      %s42 = scalar_select %p41, 0, %s40
      %s43 = ssub.s32 %s30, %s42
      %s44 = ssub.s32 %s31, %s38
      %s45 = sor.u32 %s43, %s44
      %p46 = scmp.eq.s32.totalorder %s45, 0
      %s48 = sadd.s32 %s47, 1
      %s49 = scalar_select %p46, %s47, %s48
      %p52 = pneg %p46
      %p53 = scmp.eq.s32.totalorder %s23, 7
      %p54 = por %p52, %p53
      %p55 = scmp.ne.s32.totalorder %s47, %s50
      %p56 = scmp.eq.s32.totalorder %s23, 0
      %p57 = por %p55, %p56
      %p58 = scmp.ne.s32.totalorder %s47, %s50
      %p59 = scmp.eq.s32.totalorder %s28, 7
      %p60 = por %p58, %p59
      %p61 = scmp.ne.s32.totalorder %s50, %s51
      %p62 = scmp.eq.s32.totalorder %s28, 0
      %p63 = por %p61, %p62
      %p64 = scmp.ne.s32.totalorder %s50, %s51
      %p65 = scmp.eq.s32.totalorder %s29, 7
      %p66 = por %p64, %p65
      %p68 = scmp.ne.s32.totalorder %s51, %s67
      %p69 = scmp.eq.s32.totalorder %s29, 0
      %p70 = por %p68, %p69
      %s71 = ssub.s32 %s30, %s42
      %p72 = scmp.eq.s32.totalorder %s71, 0
      %s74 = sadd.s32 %s73, 1
      %s75 = scalar_select %p72, %s73, %s74
      %p78 = pneg %p72
      %p79 = scmp.eq.s32.totalorder %s23, 7
      %p80 = por %p78, %p79
      %p81 = scmp.ne.s32.totalorder %s73, %s76
      %p82 = scmp.eq.s32.totalorder %s23, 0
      %p83 = por %p81, %p82
      %p84 = scmp.ne.s32.totalorder %s73, %s76
      %p85 = scmp.eq.s32.totalorder %s28, 7
      %p86 = por %p84, %p85
      %p87 = scmp.ne.s32.totalorder %s76, %s77
      %p88 = scmp.eq.s32.totalorder %s28, 0
      %p89 = por %p87, %p88
      %p90 = scmp.ne.s32.totalorder %s76, %s77
      %p91 = scmp.eq.s32.totalorder %s29, 7
      %p92 = por %p90, %p91
      %p94 = scmp.ne.s32.totalorder %s77, %s93
      %p95 = scmp.eq.s32.totalorder %s29, 0
      %p96 = por %p94, %p95
      %s97 = ssub.s32 %s30, %s42
      %p98 = scmp.eq.s32.totalorder %s97, 0
      %s100 = sadd.s32 %s99, 1
      %s101 = scalar_select %p98, %s99, %s100
      %p104 = pneg %p98
      %p105 = scmp.eq.s32.totalorder %s23, 7
      %p106 = por %p104, %p105
      %p107 = scmp.ne.s32.totalorder %s99, %s102
      %p108 = scmp.eq.s32.totalorder %s23, 0
      %p109 = por %p107, %p108
      %p110 = scmp.ne.s32.totalorder %s99, %s102
      %p111 = scmp.eq.s32.totalorder %s28, 7
      %p112 = por %p110, %p111
      %p113 = scmp.ne.s32.totalorder %s102, %s103
      %p114 = scmp.eq.s32.totalorder %s28, 0
      %p115 = por %p113, %p114
      %p116 = scmp.ne.s32.totalorder %s102, %s103
      %p117 = scmp.eq.s32.totalorder %s29, 7
      %p118 = por %p116, %p117
      %p120 = scmp.ne.s32.totalorder %s103, %s119
      %p121 = scmp.eq.s32.totalorder %s29, 0
      %p122 = por %p120, %p121
      %s124 = sadd.s32 %s123, 1
      %p127 = scmp.eq.s32.totalorder %s23, 7
      %p128 = scmp.ne.s32.totalorder %s123, %s125
      %p129 = scmp.eq.s32.totalorder %s23, 0
      %p130 = por %p128, %p129
      %p131 = scmp.ne.s32.totalorder %s123, %s125
      %p132 = scmp.eq.s32.totalorder %s28, 7
      %p133 = por %p131, %p132
      %p134 = scmp.ne.s32.totalorder %s125, %s126
      %p135 = scmp.eq.s32.totalorder %s28, 0
      %p136 = por %p134, %p135
      %p137 = scmp.ne.s32.totalorder %s125, %s126
      %p138 = scmp.eq.s32.totalorder %s29, 7
      %p139 = por %p137, %p138
      %p141 = scmp.ne.s32.totalorder %s126, %s140
      %p142 = scmp.eq.s32.totalorder %s29, 0
      %p143 = por %p141, %p142
      %s145 = sadd.s32 %s144, 1
      %p148 = scmp.eq.s32.totalorder %s23, 7
      %p149 = scmp.ne.s32.totalorder %s144, %s146
      %p150 = scmp.eq.s32.totalorder %s23, 0
      %p151 = por %p149, %p150
      %p152 = scmp.ne.s32.totalorder %s144, %s146
      %p153 = scmp.eq.s32.totalorder %s28, 7
      %p154 = por %p152, %p153
      %p155 = scmp.ne.s32.totalorder %s146, %s147
      %p156 = scmp.eq.s32.totalorder %s28, 0
      %p157 = por %p155, %p156
      %p158 = scmp.ne.s32.totalorder %s146, %s147
      %p159 = scmp.eq.s32.totalorder %s29, 7
      %p160 = por %p158, %p159
      %p162 = scmp.ne.s32.totalorder %s147, %s161
      %p163 = scmp.eq.s32.totalorder %s29, 0
      %p164 = por %p162, %p163
      %s166 = sadd.s32 %s165, 1
      %p169 = scmp.eq.s32.totalorder %s23, 7
      %p170 = scmp.ne.s32.totalorder %s165, %s167
      %p171 = scmp.eq.s32.totalorder %s23, 0
      %p172 = por %p170, %p171
      %p173 = scmp.ne.s32.totalorder %s165, %s167
      %p174 = scmp.eq.s32.totalorder %s28, 7
      %p175 = por %p173, %p174
      %p176 = scmp.ne.s32.totalorder %s167, %s168
      %p177 = scmp.eq.s32.totalorder %s28, 0
      %p178 = por %p176, %p177
      %p179 = scmp.ne.s32.totalorder %s167, %s168
      %p180 = scmp.eq.s32.totalorder %s29, 7
      %p181 = por %p179, %p180
      %p183 = scmp.ne.s32.totalorder %s168, %s182
      %p184 = scmp.eq.s32.totalorder %s29, 0
      %p185 = por %p183, %p184
      %s187 = sadd.s32 %s186, 1
      %p190 = scmp.eq.s32.totalorder %s23, 7
      %p191 = scmp.ne.s32.totalorder %s186, %s188
      %p192 = scmp.eq.s32.totalorder %s23, 0
      %p193 = por %p191, %p192
      %p194 = scmp.ne.s32.totalorder %s186, %s188
      %p195 = scmp.eq.s32.totalorder %s28, 7
      %p196 = por %p194, %p195
      %p197 = scmp.ne.s32.totalorder %s188, %s189
      %p198 = scmp.eq.s32.totalorder %s28, 0
      %p199 = por %p197, %p198
      %p200 = scmp.ne.s32.totalorder %s188, %s189
      %p201 = scmp.eq.s32.totalorder %s29, 7
      %p202 = por %p200, %p201
      %p204 = scmp.ne.s32.totalorder %s189, %s203
      %p205 = scmp.eq.s32.totalorder %s29, 0
      %p206 = por %p204, %p205
      %s207 = ssub.s32 %s30, %s42
      %s208 = ssub.s32 %s31, %s38
      %s209 = sor.u32 %s207, %s208
      %p210 = scmp.eq.s32.totalorder %s209, 0
      %s212 = sadd.s32 %s211, 1
      %s213 = scalar_select %p210, %s211, %s212
      %p216 = pneg %p210
      %p217 = scmp.eq.s32.totalorder %s23, 7
      %p218 = por %p216, %p217
      %p219 = scmp.ne.s32.totalorder %s211, %s214
      %p220 = scmp.eq.s32.totalorder %s23, 0
      %p221 = por %p219, %p220
      %p222 = scmp.ne.s32.totalorder %s211, %s214
      %p223 = scmp.eq.s32.totalorder %s28, 7
      %p224 = por %p222, %p223
      %p225 = scmp.ne.s32.totalorder %s214, %s215
      %p226 = scmp.eq.s32.totalorder %s28, 0
      %p227 = por %p225, %p226
      %p228 = scmp.ne.s32.totalorder %s214, %s215
      %p229 = scmp.eq.s32.totalorder %s29, 7
      %p230 = por %p228, %p229
      %p232 = scmp.ne.s32.totalorder %s215, %s231
      %p233 = scmp.eq.s32.totalorder %s29, 0
      %p234 = por %p232, %p233
      %p235 = scmp.le.s32.totalorder 1, %s23
      %p236 = scmp.lt.s32.totalorder %s23, 9
      %p237 = pnand %p235, %p236
      %p238 = pneg %p237
      // Predicated region
      $region9: #{tpu_custom_call.1} parent=5 // pred_check
        _
      $region10: #{tpu_custom_call.1} parent=5 // pred_check_branch
        %240 = sbr.rel (%p237) target = $region12
      $region11: #{tpu_custom_call.1} parent=5 // pred_region
        %s241 = ssub.s32 %s23, 1
        // Predicated region
        $region13: #{tpu_custom_call.1} parent=11 // pred_check
          %p242 = pneg %p136
        $region14: #{tpu_custom_call.1} parent=11 // pred_check_branch
          %244 = sbr.rel (%p242) target = $region16
        $region15: #{tpu_custom_call.1} parent=11 // pred_region
          %s246 = ssub.s32 2048, 2048
          %247 = vsyncadd [#allocation9], %s246
          %s248 = sshll.u32 [#allocation8], 4
          %s249 = int_to_ptr.vmem [resolvable:$true] %s248
          %254 = dma.hbm_to_vmem [thread:$0]  %s3, 2048, %s249, [#allocation9], 128, 128, 8
        $region16: #{tpu_custom_call.1} parent=11 // pred_fallthru
          _
        // Predicated region
        $region17: #{tpu_custom_call.1} parent=11 // pred_check
          %p255 = pneg %p157
        $region18: #{tpu_custom_call.1} parent=11 // pred_check_branch
          %257 = sbr.rel (%p255) target = $region20
        $region19: #{tpu_custom_call.1} parent=11 // pred_region
          _
        $region20: #{tpu_custom_call.1} parent=11 // pred_fallthru
          _
        // Predicated region
        $region21: #{tpu_custom_call.1} parent=11 // pred_check
          %p258 = pneg %p178
        $region22: #{tpu_custom_call.1} parent=11 // pred_check_branch
          %260 = sbr.rel (%p258) target = $region24
        $region23: #{tpu_custom_call.1} parent=11 // pred_region
          %s262 = ssub.s32 2048, 2048
          %263 = vsyncadd [#allocation9], %s262
          %s264 = sshll.u32 [#allocation10], 4
          %s265 = int_to_ptr.vmem [resolvable:$true] %s264
          %270 = dma.hbm_to_vmem [thread:$0]  %s5, 2048, %s265, [#allocation9], 128, 128, 8
        $region24: #{tpu_custom_call.1} parent=11 // pred_fallthru
          _
        // Predicated region
        $region25: #{tpu_custom_call.1} parent=11 // pred_check
          %p271 = pneg %p199
        $region26: #{tpu_custom_call.1} parent=11 // pred_check_branch
          %273 = sbr.rel (%p271) target = $region28
        $region27: #{tpu_custom_call.1} parent=11 // pred_region
          _
        $region28: #{tpu_custom_call.1} parent=11 // pred_fallthru
          _
      $region12: #{tpu_custom_call.1} parent=5 // pred_fallthru
        _
      %p274 = scmp.lt.s32.totalorder %s23, 8
      // Predicated region
      $region29: #{tpu_custom_call.1} parent=5 // pred_check
        %p275 = pneg %p274
      $region30: #{tpu_custom_call.1} parent=5 // pred_check_branch
        %277 = sbr.rel (%p275) target = $region32
      $region31: #{tpu_custom_call.1} parent=5 // pred_region
        // Predicated region
        $region33: #{tpu_custom_call.1} parent=31 // pred_check
          %p278 = pneg %p57
        $region34: #{tpu_custom_call.1} parent=31 // pred_check_branch
          %280 = sbr.rel (%p278) target = $region36
        $region35: #{tpu_custom_call.1} parent=31 // pred_region
          %s281 = sand.u32 %s47, 1
          %s282 = scalar_lea.sflag [#allocation3], %s281
          %s283 = sand.u32 %s47, 1
          %s284 = smul.addr %s283, 128
          %s285 = scalar_lea.vmem [#allocation2], %s284
          %s286 = smul.u32 16, %s31
          %s288 = ssub.s32 2048, 2048
          %289 = vsyncadd %s282, %s288
          %s290 = smul.addr %s30, 64
          %s291 = sadd.s32 %s286, %s290
          %s292 = smul.addr %s291, 128
          %s293 = scalar_lea.hbm %s0, %s292
          %s294 = sshll.u32 %s285, 4
          %s295 = int_to_ptr.vmem [resolvable:$true] %s294
          %300 = dma.hbm_to_vmem [thread:$0]  %s293, 2048, %s295, %s282, 128, 128, 8
        $region36: #{tpu_custom_call.1} parent=31 // pred_fallthru
          _
        // Predicated region
        $region37: #{tpu_custom_call.1} parent=31 // pred_check
          %p301 = pneg %p83
        $region38: #{tpu_custom_call.1} parent=31 // pred_check_branch
          %303 = sbr.rel (%p301) target = $region40
        $region39: #{tpu_custom_call.1} parent=31 // pred_region
          %s304 = sand.u32 %s23, 1
          %s305 = scalar_lea.sflag [#allocation6], %s304
          %s306 = sand.u32 %s73, 1
          %s307 = smul.addr %s306, 128
          %s308 = scalar_lea.vmem [#allocation5], %s307
          %s310 = ssub.s32 2048, 2048
          %311 = vsyncadd %s305, %s310
          %s312 = smul.addr %s30, 16
          %s313 = smul.addr %s312, 128
          %s314 = scalar_lea.hbm %s1, %s313
          %s315 = sshll.u32 %s308, 4
          %s316 = int_to_ptr.vmem [resolvable:$true] %s315
          %321 = dma.hbm_to_vmem [thread:$0]  %s314, 2048, %s316, %s305, 128, 128, 8
        $region40: #{tpu_custom_call.1} parent=31 // pred_fallthru
          _
        // Predicated region
        $region41: #{tpu_custom_call.1} parent=31 // pred_check
          %p322 = pneg %p109
        $region42: #{tpu_custom_call.1} parent=31 // pred_check_branch
          %324 = sbr.rel (%p322) target = $region44
        $region43: #{tpu_custom_call.1} parent=31 // pred_region
          %s325 = sand.u32 %s23, 1
          %s326 = scalar_lea.sflag [#allocation6], %s325
          %s327 = sand.u32 %s99, 1
          %s328 = smul.addr %s327, 128
          %s329 = scalar_lea.vmem [#allocation7], %s328
          %s331 = ssub.s32 2048, 2048
          %332 = vsyncadd %s326, %s331
          %s333 = smul.addr %s30, 16
          %s334 = smul.addr %s333, 128
          %s335 = scalar_lea.hbm %s2, %s334
          %s336 = sshll.u32 %s329, 4
          %s337 = int_to_ptr.vmem [resolvable:$true] %s336
          %342 = dma.hbm_to_vmem [thread:$0]  %s335, 2048, %s337, %s326, 128, 128, 8
        $region44: #{tpu_custom_call.1} parent=31 // pred_fallthru
          _
      $region32: #{tpu_custom_call.1} parent=5 // pred_fallthru
        _
      %p343 = scmp.le.s32.totalorder 1, %s23
      %p344 = scmp.lt.s32.totalorder %s23, 9
      %p345 = pnand %p343, %p344
      %p346 = pneg %p345
      // Predicated region
      $region45: #{tpu_custom_call.1} parent=5 // pred_check
        _
      $region46: #{tpu_custom_call.1} parent=5 // pred_check_branch
        %348 = sbr.rel (%p345) target = $region48
      $region47: #{tpu_custom_call.1} parent=5 // pred_region
        %s349 = ssub.s32 %s23, 1
        %s350 = sand.u32 %s50, 1
        %s351 = scalar_lea.sflag [#allocation3], %s350
        %s352 = sand.u32 %s50, 1
        %s353 = smul.addr %s352, 128
        %s354 = scalar_lea.vmem [#allocation2], %s353
        // Predicated region
        $region49: #{tpu_custom_call.1} parent=47 // pred_check
          %p355 = pneg %p63
        $region50: #{tpu_custom_call.1} parent=47 // pred_check_branch
          %357 = sbr.rel (%p355) target = $region52
        $region51: #{tpu_custom_call.1} parent=47 // pred_region
          %358 = dma.done %s351, 2048
        $region52: #{tpu_custom_call.1} parent=47 // pred_fallthru
          _
        %s359 = sand.u32 %s28, 1
        %s360 = scalar_lea.sflag [#allocation6], %s359
        %s361 = sand.u32 %s76, 1
        %s362 = smul.addr %s361, 128
        %s363 = scalar_lea.vmem [#allocation5], %s362
        // Predicated region
        $region53: #{tpu_custom_call.1} parent=47 // pred_check
          %p364 = pneg %p89
        $region54: #{tpu_custom_call.1} parent=47 // pred_check_branch
          %366 = sbr.rel (%p364) target = $region56
        $region55: #{tpu_custom_call.1} parent=47 // pred_region
          %367 = dma.done %s360, 2048
        $region56: #{tpu_custom_call.1} parent=47 // pred_fallthru
          _
        %s368 = sand.u32 %s28, 1
        %s369 = scalar_lea.sflag [#allocation6], %s368
        %s370 = sand.u32 %s102, 1
        %s371 = smul.addr %s370, 128
        %s372 = scalar_lea.vmem [#allocation7], %s371
        // Predicated region
        $region57: #{tpu_custom_call.1} parent=47 // pred_check
          %p373 = pneg %p115
        $region58: #{tpu_custom_call.1} parent=47 // pred_check_branch
          %375 = sbr.rel (%p373) target = $region60
        $region59: #{tpu_custom_call.1} parent=47 // pred_region
          %376 = dma.done %s369, 2048
        $region60: #{tpu_custom_call.1} parent=47 // pred_fallthru
          _
        // Predicated region
        $region61: #{tpu_custom_call.1} parent=47 // pred_check
          %p377 = pneg %p136
        $region62: #{tpu_custom_call.1} parent=47 // pred_check_branch
          %379 = sbr.rel (%p377) target = $region64
        $region63: #{tpu_custom_call.1} parent=47 // pred_region
          %380 = dma.done [#allocation9], 2048
        $region64: #{tpu_custom_call.1} parent=47 // pred_fallthru
          _
        // Predicated region
        $region65: #{tpu_custom_call.1} parent=47 // pred_check
          %p381 = pneg %p178
        $region66: #{tpu_custom_call.1} parent=47 // pred_check_branch
          %383 = sbr.rel (%p381) target = $region68
        $region67: #{tpu_custom_call.1} parent=47 // pred_region
          %384 = dma.done [#allocation9], 2048
        $region68: #{tpu_custom_call.1} parent=47 // pred_fallthru
          _
        %s385 = sand.u32 %s50, 1
        %s386 = scalar_lea.sflag [#allocation3], %s385
        %s387 = sand.u32 %s50, 1
        %s388 = smul.addr %s387, 128
        %s389 = scalar_lea.vmem [#allocation2], %s388
        %p390 = pneg %p63
        %p391 = pneg %p60
        %s392 = sand.u32 %s28, 1
        %s393 = scalar_lea.sflag [#allocation6], %s392
        %s394 = sand.u32 %s76, 1
        %s395 = smul.addr %s394, 128
        %s396 = scalar_lea.vmem [#allocation5], %s395
        %p397 = pneg %p89
        %p398 = pneg %p86
        %s399 = sand.u32 %s28, 1
        %s400 = scalar_lea.sflag [#allocation6], %s399
        %s401 = sand.u32 %s102, 1
        %s402 = smul.addr %s401, 128
        %s403 = scalar_lea.vmem [#allocation7], %s402
        %p404 = pneg %p115
        %p405 = pneg %p112
        %p406 = pneg %p136
        %p407 = pneg %p133
        %p408 = pneg %p157
        %p409 = pneg %p154
        %p410 = pneg %p178
        %p411 = pneg %p175
        %p412 = pneg %p199
        %p413 = pneg %p196
        %p414 = pneg %p227
        %p415 = pneg %p224
        %s416 = sand.u32 %s214, 1
        %s417 = scalar_lea.sflag [#allocation4], %s416
        %s418 = sand.u32 %s214, 1
        %s419 = smul.addr %s418, 128
        %s420 = scalar_lea.vmem [#allocation11], %s419
        %s421 = smul.u32 16, %s33
        %s422 = smul.u32 16, %s33
        %v423 = vld [vmem:[%s354] sm:$0xff]
        %v424 = vld [vmem:[%s354 + $0x8] sm:$0xff]
        %v425 = vld [vmem:[%s354 + $0x10] sm:$0xff]
        %v426 = vld [vmem:[%s354 + $0x18] sm:$0xff]
        %v427 = vld [vmem:[%s354 + $0x20] sm:$0xff]
        %v428 = vld [vmem:[%s354 + $0x28] sm:$0xff]
        %v429 = vld [vmem:[%s354 + $0x30] sm:$0xff]
        %v430 = vld [vmem:[%s354 + $0x38] sm:$0xff]
        %v431 = vld [vmem:[%s354 + $0x40] sm:$0xff]
        %v432 = vld [vmem:[%s354 + $0x48] sm:$0xff]
        %v433 = vld [vmem:[%s354 + $0x50] sm:$0xff]
        %v434 = vld [vmem:[%s354 + $0x58] sm:$0xff]
        %v435 = vld [vmem:[%s354 + $0x60] sm:$0xff]
        %v436 = vld [vmem:[%s354 + $0x68] sm:$0xff]
        %v437 = vld [vmem:[%s354 + $0x70] sm:$0xff]
        %v438 = vld [vmem:[%s354 + $0x78] sm:$0xff]
        %v439 = vld [vmem:[#allocation8] sm:$0xff]
        %v440 = vld [vmem:[#allocation8 + $0x8] sm:$0xff]
        %v441 = vld [vmem:[#allocation8 + $0x10] sm:$0xff]
        %v442 = vld [vmem:[#allocation8 + $0x18] sm:$0xff]
        %v443 = vld [vmem:[#allocation8 + $0x20] sm:$0xff]
        %v444 = vld [vmem:[#allocation8 + $0x28] sm:$0xff]
        %v445 = vld [vmem:[#allocation8 + $0x30] sm:$0xff]
        %v446 = vld [vmem:[#allocation8 + $0x38] sm:$0xff]
        %v447 = vld [vmem:[#allocation8 + $0x40] sm:$0xff]
        %v448 = vld [vmem:[#allocation8 + $0x48] sm:$0xff]
        %v449 = vld [vmem:[#allocation8 + $0x50] sm:$0xff]
        %v450 = vld [vmem:[#allocation8 + $0x58] sm:$0xff]
        %v451 = vld [vmem:[#allocation8 + $0x60] sm:$0xff]
        %v452 = vld [vmem:[#allocation8 + $0x68] sm:$0xff]
        %v453 = vld [vmem:[#allocation8 + $0x70] sm:$0xff]
        %v454 = vld [vmem:[#allocation8 + $0x78] sm:$0xff]
        %v455 = vld [vmem:[%s4] sm:$0x1]
        %v457 = vlaneseq
        %v458 = vshrl.u32 %v457, 7
        %v459 = vsub.s32 0, %v458
        %v460 = vrot.slane %v455, %v459
        %462 = vmatprep.subr.mxu0 0.0
        %463 = vmatpush1.msra.mxu0 %v454
        %464 = vmatprep.subr.mxu0 0.0
        %465 = vmatpush1.msra.mxu0 %v453
        %466 = vmatprep.subr.mxu0 0.0
        %467 = vmatpush1.msra.mxu0 %v452
        %468 = vmatprep.subr.mxu0 0.0
        %469 = vmatpush1.msra.mxu0 %v451
        %470 = vmatprep.subr.mxu0 0.0
        %471 = vmatpush1.msra.mxu0 %v450
        %472 = vmatprep.subr.mxu0 0.0
        %473 = vmatpush1.msra.mxu0 %v449
        %474 = vmatprep.subr.mxu0 0.0
        %475 = vmatpush1.msra.mxu0 %v448
        %476 = vmatprep.subr.mxu0 0.0
        %477 = vmatpush1.msra.mxu0 %v447
        %478 = vmatprep.subr.mxu0 0.0
        %479 = vmatpush1.msra.mxu0 %v446
        %480 = vmatprep.subr.mxu0 0.0
        %481 = vmatpush1.msra.mxu0 %v445
        %482 = vmatprep.subr.mxu0 0.0
        %483 = vmatpush1.msra.mxu0 %v444
        %484 = vmatprep.subr.mxu0 0.0
        %485 = vmatpush1.msra.mxu0 %v443
        %486 = vmatprep.subr.mxu0 0.0
        %487 = vmatpush1.msra.mxu0 %v442
        %488 = vmatprep.subr.mxu0 0.0
        %489 = vmatpush1.msra.mxu0 %v441
        %490 = vmatprep.subr.mxu0 0.0
        %491 = vmatpush1.msra.mxu0 %v440
        %492 = vmatprep.subr.mxu0 0.0
        %493 = vmatpush1.msra.mxu0 %v439
        %494 = vmatprep.subr.mxu0 0.0
        %495 = vmatpush2.msra.mxu0 0.0
        %496 = vmatprep.subr.mxu0 0.0
        %497 = vmatpush2.msra.mxu0 0.0
        %498 = vmatprep.subr.mxu0 0.0
        %499 = vmatpush2.msra.mxu0 0.0
        %500 = vmatprep.subr.mxu0 0.0
        %501 = vmatpush2.msra.mxu0 0.0
        %502 = vmatprep.subr.mxu0 0.0
        %503 = vmatpush2.msra.mxu0 0.0
        %504 = vmatprep.subr.mxu0 0.0
        %505 = vmatpush2.msra.mxu0 0.0
        %506 = vmatprep.subr.mxu0 0.0
        %507 = vmatpush2.msra.mxu0 0.0
        %508 = vmatprep.subr.mxu0 0.0
        %509 = vmatpush2.msra.mxu0 0.0
        %510 = vmatprep.subr.mxu0 0.0
        %511 = vmatpush2.msra.mxu0 0.0
        %512 = vmatprep.subr.mxu0 0.0
        %513 = vmatpush2.msra.mxu0 0.0
        %514 = vmatprep.subr.mxu0 0.0
        %515 = vmatpush2.msra.mxu0 0.0
        %516 = vmatprep.subr.mxu0 0.0
        %517 = vmatpush2.msra.mxu0 0.0
        %518 = vmatprep.subr.mxu0 0.0
        %519 = vmatpush2.msra.mxu0 0.0
        %520 = vmatprep.subr.mxu0 0.0
        %521 = vmatpush2.msra.mxu0 0.0
        %522 = vmatprep.subr.mxu0 0.0
        %523 = vmatpush2.msra.mxu0 0.0
        %524 = vmatprep.subr.mxu0 0.0
        %525 = vmatpush2.msra.mxu0 0.0
        %526 = vmatprep.mubr.f32.mxu0 0.0
        %527 = vmatmul.mubr.f32.gmra.mxu0 %v423
        %v528 = vpop.f32.mrf.mxu0
        %v529 = vadd.f32 %v460, %v528
        %v530 = vpop.f32.mrf.mxu0
        %531 = vmatprep.mubr.f32.mxu0 0.0
        %532 = vmatmul.mubr.f32.gmra.mxu0 %v424
        %v533 = vpop.f32.mrf.mxu0
        %v534 = vadd.f32 %v460, %v533
        %v535 = vpop.f32.mrf.mxu0
        %536 = vmatprep.mubr.f32.mxu0 0.0
        %537 = vmatmul.mubr.f32.gmra.mxu0 %v425
        %v538 = vpop.f32.mrf.mxu0
        %v539 = vadd.f32 %v460, %v538
        %v540 = vpop.f32.mrf.mxu0
        %541 = vmatprep.mubr.f32.mxu0 0.0
        %542 = vmatmul.mubr.f32.gmra.mxu0 %v426
        %v543 = vpop.f32.mrf.mxu0
        %v544 = vadd.f32 %v460, %v543
        %v545 = vpop.f32.mrf.mxu0
        %546 = vmatprep.mubr.f32.mxu0 0.0
        %547 = vmatmul.mubr.f32.gmra.mxu0 %v427
        %v548 = vpop.f32.mrf.mxu0
        %v549 = vadd.f32 %v460, %v548
        %v550 = vpop.f32.mrf.mxu0
        %551 = vmatprep.mubr.f32.mxu0 0.0
        %552 = vmatmul.mubr.f32.gmra.mxu0 %v428
        %v553 = vpop.f32.mrf.mxu0
        %v554 = vadd.f32 %v460, %v553
        %v555 = vpop.f32.mrf.mxu0
        %556 = vmatprep.mubr.f32.mxu0 0.0
        %557 = vmatmul.mubr.f32.gmra.mxu0 %v429
        %v558 = vpop.f32.mrf.mxu0
        %v559 = vadd.f32 %v460, %v558
        %v560 = vpop.f32.mrf.mxu0
        %561 = vmatprep.mubr.f32.mxu0 0.0
        %562 = vmatmul.mubr.f32.gmra.mxu0 %v430
        %v563 = vpop.f32.mrf.mxu0
        %v564 = vadd.f32 %v460, %v563
        %v565 = vpop.f32.mrf.mxu0
        %566 = vmatprep.mubr.f32.mxu0 0.0
        %567 = vmatmul.mubr.f32.gmra.mxu0 %v431
        %v568 = vpop.f32.mrf.mxu0
        %v569 = vadd.f32 %v460, %v568
        %v570 = vpop.f32.mrf.mxu0
        %571 = vmatprep.mubr.f32.mxu0 0.0
        %572 = vmatmul.mubr.f32.gmra.mxu0 %v432
        %v573 = vpop.f32.mrf.mxu0
        %v574 = vadd.f32 %v460, %v573
        %v575 = vpop.f32.mrf.mxu0
        %576 = vmatprep.mubr.f32.mxu0 0.0
        %577 = vmatmul.mubr.f32.gmra.mxu0 %v433
        %v578 = vpop.f32.mrf.mxu0
        %v579 = vadd.f32 %v460, %v578
        %v580 = vpop.f32.mrf.mxu0
        %581 = vmatprep.mubr.f32.mxu0 0.0
        %582 = vmatmul.mubr.f32.gmra.mxu0 %v434
        %v583 = vpop.f32.mrf.mxu0
        %v584 = vadd.f32 %v460, %v583
        %v585 = vpop.f32.mrf.mxu0
        %586 = vmatprep.mubr.f32.mxu0 0.0
        %587 = vmatmul.mubr.f32.gmra.mxu0 %v435
        %v588 = vpop.f32.mrf.mxu0
        %v589 = vadd.f32 %v460, %v588
        %v590 = vpop.f32.mrf.mxu0
        %591 = vmatprep.mubr.f32.mxu0 0.0
        %592 = vmatmul.mubr.f32.gmra.mxu0 %v436
        %v593 = vpop.f32.mrf.mxu0
        %v594 = vadd.f32 %v460, %v593
        %v595 = vpop.f32.mrf.mxu0
        %596 = vmatprep.mubr.f32.mxu0 0.0
        %597 = vmatmul.mubr.f32.gmra.mxu0 %v437
        %v598 = vpop.f32.mrf.mxu0
        %v599 = vadd.f32 %v460, %v598
        %v600 = vpop.f32.mrf.mxu0
        %601 = vmatprep.mubr.f32.mxu0 0.0
        %602 = vmatmul.mubr.f32.gmra.mxu0 %v438
        %v603 = vpop.f32.mrf.mxu0
        %v604 = vadd.f32 %v460, %v603
        %v605 = vpop.f32.mrf.mxu0
        %606 = vdwg.mxu0
        %v607 = vld [vmem:[%s363] sm:$0xff]
        %v608 = vld [vmem:[%s363 + $0x8] sm:$0xff]
        %v609 = vld [vmem:[%s363 + $0x10] sm:$0xff]
        %v610 = vld [vmem:[%s363 + $0x18] sm:$0xff]
        %v611 = vld [vmem:[%s363 + $0x20] sm:$0xff]
        %v612 = vld [vmem:[%s363 + $0x28] sm:$0xff]
        %v613 = vld [vmem:[%s363 + $0x30] sm:$0xff]
        %v614 = vld [vmem:[%s363 + $0x38] sm:$0xff]
        %v615 = vld [vmem:[%s363 + $0x40] sm:$0xff]
        %v616 = vld [vmem:[%s363 + $0x48] sm:$0xff]
        %v617 = vld [vmem:[%s363 + $0x50] sm:$0xff]
        %v618 = vld [vmem:[%s363 + $0x58] sm:$0xff]
        %v619 = vld [vmem:[%s363 + $0x60] sm:$0xff]
        %v620 = vld [vmem:[%s363 + $0x68] sm:$0xff]
        %v621 = vld [vmem:[%s363 + $0x70] sm:$0xff]
        %v622 = vld [vmem:[%s363 + $0x78] sm:$0xff]
        %623 = vmatprep.subr.mxu0 0.0
        %624 = vmatpush1.msra.mxu0 %v622
        %625 = vmatprep.subr.mxu0 0.0
        %626 = vmatpush1.msra.mxu0 %v621
        %627 = vmatprep.subr.mxu0 0.0
        %628 = vmatpush1.msra.mxu0 %v620
        %629 = vmatprep.subr.mxu0 0.0
        %630 = vmatpush1.msra.mxu0 %v619
        %631 = vmatprep.subr.mxu0 0.0
        %632 = vmatpush1.msra.mxu0 %v618
        %633 = vmatprep.subr.mxu0 0.0
        %634 = vmatpush1.msra.mxu0 %v617
        %635 = vmatprep.subr.mxu0 0.0
        %636 = vmatpush1.msra.mxu0 %v616
        %637 = vmatprep.subr.mxu0 0.0
        %638 = vmatpush1.msra.mxu0 %v615
        %639 = vmatprep.subr.mxu0 0.0
        %640 = vmatpush1.msra.mxu0 %v614
        %641 = vmatprep.subr.mxu0 0.0
        %642 = vmatpush1.msra.mxu0 %v613
        %643 = vmatprep.subr.mxu0 0.0
        %644 = vmatpush1.msra.mxu0 %v612
        %645 = vmatprep.subr.mxu0 0.0
        %646 = vmatpush1.msra.mxu0 %v611
        %647 = vmatprep.subr.mxu0 0.0
        %648 = vmatpush1.msra.mxu0 %v610
        %649 = vmatprep.subr.mxu0 0.0
        %650 = vmatpush1.msra.mxu0 %v609
        %651 = vmatprep.subr.mxu0 0.0
        %652 = vmatpush1.msra.mxu0 %v608
        %653 = vmatprep.subr.mxu0 0.0
        %654 = vmatpush1.msra.mxu0 %v607
        %655 = vmatprep.subr.mxu0 0.0
        %656 = vmatpush2.msra.mxu0 0.0
        %657 = vmatprep.subr.mxu0 0.0
        %658 = vmatpush2.msra.mxu0 0.0
        %659 = vmatprep.subr.mxu0 0.0
        %660 = vmatpush2.msra.mxu0 0.0
        %661 = vmatprep.subr.mxu0 0.0
        %662 = vmatpush2.msra.mxu0 0.0
        %663 = vmatprep.subr.mxu0 0.0
        %664 = vmatpush2.msra.mxu0 0.0
        %665 = vmatprep.subr.mxu0 0.0
        %666 = vmatpush2.msra.mxu0 0.0
        %667 = vmatprep.subr.mxu0 0.0
        %668 = vmatpush2.msra.mxu0 0.0
        %669 = vmatprep.subr.mxu0 0.0
        %670 = vmatpush2.msra.mxu0 0.0
        %671 = vmatprep.subr.mxu0 0.0
        %672 = vmatpush2.msra.mxu0 0.0
        %673 = vmatprep.subr.mxu0 0.0
        %674 = vmatpush2.msra.mxu0 0.0
        %675 = vmatprep.subr.mxu0 0.0
        %676 = vmatpush2.msra.mxu0 0.0
        %677 = vmatprep.subr.mxu0 0.0
        %678 = vmatpush2.msra.mxu0 0.0
        %679 = vmatprep.subr.mxu0 0.0
        %680 = vmatpush2.msra.mxu0 0.0
        %681 = vmatprep.subr.mxu0 0.0
        %682 = vmatpush2.msra.mxu0 0.0
        %683 = vmatprep.subr.mxu0 0.0
        %684 = vmatpush2.msra.mxu0 0.0
        %685 = vmatprep.subr.mxu0 0.0
        %686 = vmatpush2.msra.mxu0 0.0
        %687 = vmatprep.mubr.f32.mxu0 0.0
        %688 = vmatmul.mubr.f32.gmra.mxu0 %v529
        %v689 = vpop.f32.mrf.mxu0
        %v690 = vadd.f32 0.0, %v689
        %v691 = vpop.f32.mrf.mxu0
        %692 = vmatprep.mubr.f32.mxu0 0.0
        %693 = vmatmul.mubr.f32.gmra.mxu0 %v534
        %v694 = vpop.f32.mrf.mxu0
        %v695 = vadd.f32 0.0, %v694
        %v696 = vpop.f32.mrf.mxu0
        %697 = vmatprep.mubr.f32.mxu0 0.0
        %698 = vmatmul.mubr.f32.gmra.mxu0 %v539
        %v699 = vpop.f32.mrf.mxu0
        %v700 = vadd.f32 0.0, %v699
        %v701 = vpop.f32.mrf.mxu0
        %702 = vmatprep.mubr.f32.mxu0 0.0
        %703 = vmatmul.mubr.f32.gmra.mxu0 %v544
        %v704 = vpop.f32.mrf.mxu0
        %v705 = vadd.f32 0.0, %v704
        %v706 = vpop.f32.mrf.mxu0
        %707 = vmatprep.mubr.f32.mxu0 0.0
        %708 = vmatmul.mubr.f32.gmra.mxu0 %v549
        %v709 = vpop.f32.mrf.mxu0
        %v710 = vadd.f32 0.0, %v709
        %v711 = vpop.f32.mrf.mxu0
        %712 = vmatprep.mubr.f32.mxu0 0.0
        %713 = vmatmul.mubr.f32.gmra.mxu0 %v554
        %v714 = vpop.f32.mrf.mxu0
        %v715 = vadd.f32 0.0, %v714
        %v716 = vpop.f32.mrf.mxu0
        %717 = vmatprep.mubr.f32.mxu0 0.0
        %718 = vmatmul.mubr.f32.gmra.mxu0 %v559
        %v719 = vpop.f32.mrf.mxu0
        %v720 = vadd.f32 0.0, %v719
        %v721 = vpop.f32.mrf.mxu0
        %722 = vmatprep.mubr.f32.mxu0 0.0
        %723 = vmatmul.mubr.f32.gmra.mxu0 %v564
        %v724 = vpop.f32.mrf.mxu0
        %v725 = vadd.f32 0.0, %v724
        %v726 = vpop.f32.mrf.mxu0
        %727 = vmatprep.mubr.f32.mxu0 0.0
        %728 = vmatmul.mubr.f32.gmra.mxu0 %v569
        %v729 = vpop.f32.mrf.mxu0
        %v730 = vadd.f32 0.0, %v729
        %v731 = vpop.f32.mrf.mxu0
        %732 = vmatprep.mubr.f32.mxu0 0.0
        %733 = vmatmul.mubr.f32.gmra.mxu0 %v574
        %v734 = vpop.f32.mrf.mxu0
        %v735 = vadd.f32 0.0, %v734
        %v736 = vpop.f32.mrf.mxu0
        %737 = vmatprep.mubr.f32.mxu0 0.0
        %738 = vmatmul.mubr.f32.gmra.mxu0 %v579
        %v739 = vpop.f32.mrf.mxu0
        %v740 = vadd.f32 0.0, %v739
        %v741 = vpop.f32.mrf.mxu0
        %742 = vmatprep.mubr.f32.mxu0 0.0
        %743 = vmatmul.mubr.f32.gmra.mxu0 %v584
        %v744 = vpop.f32.mrf.mxu0
        %v745 = vadd.f32 0.0, %v744
        %v746 = vpop.f32.mrf.mxu0
        %747 = vmatprep.mubr.f32.mxu0 0.0
        %748 = vmatmul.mubr.f32.gmra.mxu0 %v589
        %v749 = vpop.f32.mrf.mxu0
        %v750 = vadd.f32 0.0, %v749
        %v751 = vpop.f32.mrf.mxu0
        %752 = vmatprep.mubr.f32.mxu0 0.0
        %753 = vmatmul.mubr.f32.gmra.mxu0 %v594
        %v754 = vpop.f32.mrf.mxu0
        %v755 = vadd.f32 0.0, %v754
        %v756 = vpop.f32.mrf.mxu0
        %757 = vmatprep.mubr.f32.mxu0 0.0
        %758 = vmatmul.mubr.f32.gmra.mxu0 %v599
        %v759 = vpop.f32.mrf.mxu0
        %v760 = vadd.f32 0.0, %v759
        %v761 = vpop.f32.mrf.mxu0
        %762 = vmatprep.mubr.f32.mxu0 0.0
        %763 = vmatmul.mubr.f32.gmra.mxu0 %v604
        %v764 = vpop.f32.mrf.mxu0
        %v765 = vadd.f32 0.0, %v764
        %v766 = vpop.f32.mrf.mxu0
        %767 = vdwg.mxu0
        %768 = vmax.xlane.f32.xlu0 %v690
        %v769 = vpop.xlane.xlu0 %768
        %770 = vmax.xlane.f32.xlu0 %v695
        %v771 = vpop.xlane.xlu0 %770
        %772 = vmax.xlane.f32.xlu0 %v700
        %v773 = vpop.xlane.xlu0 %772
        %774 = vmax.xlane.f32.xlu0 %v705
        %v775 = vpop.xlane.xlu0 %774
        %776 = vmax.xlane.f32.xlu0 %v710
        %v777 = vpop.xlane.xlu0 %776
        %778 = vmax.xlane.f32.xlu0 %v715
        %v779 = vpop.xlane.xlu0 %778
        %780 = vmax.xlane.f32.xlu0 %v720
        %v781 = vpop.xlane.xlu0 %780
        %782 = vmax.xlane.f32.xlu0 %v725
        %v783 = vpop.xlane.xlu0 %782
        %784 = vmax.xlane.f32.xlu0 %v730
        %v785 = vpop.xlane.xlu0 %784
        %786 = vmax.xlane.f32.xlu0 %v735
        %v787 = vpop.xlane.xlu0 %786
        %788 = vmax.xlane.f32.xlu0 %v740
        %v789 = vpop.xlane.xlu0 %788
        %790 = vmax.xlane.f32.xlu0 %v745
        %v791 = vpop.xlane.xlu0 %790
        %792 = vmax.xlane.f32.xlu0 %v750
        %v793 = vpop.xlane.xlu0 %792
        %794 = vmax.xlane.f32.xlu0 %v755
        %v795 = vpop.xlane.xlu0 %794
        %796 = vmax.xlane.f32.xlu0 %v760
        %v797 = vpop.xlane.xlu0 %796
        %798 = vmax.xlane.f32.xlu0 %v765
        %v799 = vpop.xlane.xlu0 %798
        %v800 = vsub.f32 %v690, %v769
        %v801 = vsub.f32 %v695, %v771
        %v802 = vsub.f32 %v700, %v773
        %v803 = vsub.f32 %v705, %v775
        %v804 = vsub.f32 %v710, %v777
        %v805 = vsub.f32 %v715, %v779
        %v806 = vsub.f32 %v720, %v781
        %v807 = vsub.f32 %v725, %v783
        %v808 = vsub.f32 %v730, %v785
        %v809 = vsub.f32 %v735, %v787
        %v810 = vsub.f32 %v740, %v789
        %v811 = vsub.f32 %v745, %v791
        %v812 = vsub.f32 %v750, %v793
        %v813 = vsub.f32 %v755, %v795
        %v814 = vsub.f32 %v760, %v797
        %v815 = vsub.f32 %v765, %v799
        %v816 = vmul.f32 %v800, 1.442695
        %v817 = vpow.pop %v816
        %v818 = vmul.f32 %v801, 1.442695
        %v819 = vpow.pop %v818
        %v820 = vmul.f32 %v802, 1.442695
        %v821 = vpow.pop %v820
        %v822 = vmul.f32 %v803, 1.442695
        %v823 = vpow.pop %v822
        %v824 = vmul.f32 %v804, 1.442695
        %v825 = vpow.pop %v824
        %v826 = vmul.f32 %v805, 1.442695
        %v827 = vpow.pop %v826
        %v828 = vmul.f32 %v806, 1.442695
        %v829 = vpow.pop %v828
        %v830 = vmul.f32 %v807, 1.442695
        %v831 = vpow.pop %v830
        %v832 = vmul.f32 %v808, 1.442695
        %v833 = vpow.pop %v832
        %v834 = vmul.f32 %v809, 1.442695
        %v835 = vpow.pop %v834
        %v836 = vmul.f32 %v810, 1.442695
        %v837 = vpow.pop %v836
        %v838 = vmul.f32 %v811, 1.442695
        %v839 = vpow.pop %v838
        %v840 = vmul.f32 %v812, 1.442695
        %v841 = vpow.pop %v840
        %v842 = vmul.f32 %v813, 1.442695
        %v843 = vpow.pop %v842
        %v844 = vmul.f32 %v814, 1.442695
        %v845 = vpow.pop %v844
        %v846 = vmul.f32 %v815, 1.442695
        %v847 = vpow.pop %v846
        %848 = vadd.xlane.f32.xlu0 %v817
        %v849 = vpop.xlane.xlu0 %848
        %850 = vadd.xlane.f32.xlu0 %v819
        %v851 = vpop.xlane.xlu0 %850
        %852 = vadd.xlane.f32.xlu0 %v821
        %v853 = vpop.xlane.xlu0 %852
        %854 = vadd.xlane.f32.xlu0 %v823
        %v855 = vpop.xlane.xlu0 %854
        %856 = vadd.xlane.f32.xlu0 %v825
        %v857 = vpop.xlane.xlu0 %856
        %858 = vadd.xlane.f32.xlu0 %v827
        %v859 = vpop.xlane.xlu0 %858
        %860 = vadd.xlane.f32.xlu0 %v829
        %v861 = vpop.xlane.xlu0 %860
        %862 = vadd.xlane.f32.xlu0 %v831
        %v863 = vpop.xlane.xlu0 %862
        %864 = vadd.xlane.f32.xlu0 %v833
        %v865 = vpop.xlane.xlu0 %864
        %866 = vadd.xlane.f32.xlu0 %v835
        %v867 = vpop.xlane.xlu0 %866
        %868 = vadd.xlane.f32.xlu0 %v837
        %v869 = vpop.xlane.xlu0 %868
        %870 = vadd.xlane.f32.xlu0 %v839
        %v871 = vpop.xlane.xlu0 %870
        %872 = vadd.xlane.f32.xlu0 %v841
        %v873 = vpop.xlane.xlu0 %872
        %874 = vadd.xlane.f32.xlu0 %v843
        %v875 = vpop.xlane.xlu0 %874
        %876 = vadd.xlane.f32.xlu0 %v845
        %v877 = vpop.xlane.xlu0 %876
        %878 = vadd.xlane.f32.xlu0 %v847
        %v879 = vpop.xlane.xlu0 %878
        %v880 = vld [vmem:[%s372] sm:$0xff]
        %v881 = vld [vmem:[%s372 + $0x8] sm:$0xff]
        %v882 = vld [vmem:[%s372 + $0x10] sm:$0xff]
        %v883 = vld [vmem:[%s372 + $0x18] sm:$0xff]
        %v884 = vld [vmem:[%s372 + $0x20] sm:$0xff]
        %v885 = vld [vmem:[%s372 + $0x28] sm:$0xff]
        %v886 = vld [vmem:[%s372 + $0x30] sm:$0xff]
        %v887 = vld [vmem:[%s372 + $0x38] sm:$0xff]
        %v888 = vld [vmem:[%s372 + $0x40] sm:$0xff]
        %v889 = vld [vmem:[%s372 + $0x48] sm:$0xff]
        %v890 = vld [vmem:[%s372 + $0x50] sm:$0xff]
        %v891 = vld [vmem:[%s372 + $0x58] sm:$0xff]
        %v892 = vld [vmem:[%s372 + $0x60] sm:$0xff]
        %v893 = vld [vmem:[%s372 + $0x68] sm:$0xff]
        %v894 = vld [vmem:[%s372 + $0x70] sm:$0xff]
        %v895 = vld [vmem:[%s372 + $0x78] sm:$0xff]
        %896 = vmatprep.subr.mxu0 0.0
        %897 = vmatpush1.msra.mxu0 %v895
        %898 = vmatprep.subr.mxu0 0.0
        %899 = vmatpush1.msra.mxu0 %v894
        %900 = vmatprep.subr.mxu0 0.0
        %901 = vmatpush1.msra.mxu0 %v893
        %902 = vmatprep.subr.mxu0 0.0
        %903 = vmatpush1.msra.mxu0 %v892
        %904 = vmatprep.subr.mxu0 0.0
        %905 = vmatpush1.msra.mxu0 %v891
        %906 = vmatprep.subr.mxu0 0.0
        %907 = vmatpush1.msra.mxu0 %v890
        %908 = vmatprep.subr.mxu0 0.0
        %909 = vmatpush1.msra.mxu0 %v889
        %910 = vmatprep.subr.mxu0 0.0
        %911 = vmatpush1.msra.mxu0 %v888
        %912 = vmatprep.subr.mxu0 0.0
        %913 = vmatpush1.msra.mxu0 %v887
        %914 = vmatprep.subr.mxu0 0.0
        %915 = vmatpush1.msra.mxu0 %v886
        %916 = vmatprep.subr.mxu0 0.0
        %917 = vmatpush1.msra.mxu0 %v885
        %918 = vmatprep.subr.mxu0 0.0
        %919 = vmatpush1.msra.mxu0 %v884
        %920 = vmatprep.subr.mxu0 0.0
        %921 = vmatpush1.msra.mxu0 %v883
        %922 = vmatprep.subr.mxu0 0.0
        %923 = vmatpush1.msra.mxu0 %v882
        %924 = vmatprep.subr.mxu0 0.0
        %925 = vmatpush1.msra.mxu0 %v881
        %926 = vmatprep.subr.mxu0 0.0
        %927 = vmatpush1.msra.mxu0 %v880
        %928 = vmatprep.subr.mxu0 0.0
        %929 = vmatpush2.msra.mxu0 0.0
        %930 = vmatprep.subr.mxu0 0.0
        %931 = vmatpush2.msra.mxu0 0.0
        %932 = vmatprep.subr.mxu0 0.0
        %933 = vmatpush2.msra.mxu0 0.0
        %934 = vmatprep.subr.mxu0 0.0
        %935 = vmatpush2.msra.mxu0 0.0
        %936 = vmatprep.subr.mxu0 0.0
        %937 = vmatpush2.msra.mxu0 0.0
        %938 = vmatprep.subr.mxu0 0.0
        %939 = vmatpush2.msra.mxu0 0.0
        %940 = vmatprep.subr.mxu0 0.0
        %941 = vmatpush2.msra.mxu0 0.0
        %942 = vmatprep.subr.mxu0 0.0
        %943 = vmatpush2.msra.mxu0 0.0
        %944 = vmatprep.subr.mxu0 0.0
        %945 = vmatpush2.msra.mxu0 0.0
        %946 = vmatprep.subr.mxu0 0.0
        %947 = vmatpush2.msra.mxu0 0.0
        %948 = vmatprep.subr.mxu0 0.0
        %949 = vmatpush2.msra.mxu0 0.0
        %950 = vmatprep.subr.mxu0 0.0
        %951 = vmatpush2.msra.mxu0 0.0
        %952 = vmatprep.subr.mxu0 0.0
        %953 = vmatpush2.msra.mxu0 0.0
        %954 = vmatprep.subr.mxu0 0.0
        %955 = vmatpush2.msra.mxu0 0.0
        %956 = vmatprep.subr.mxu0 0.0
        %957 = vmatpush2.msra.mxu0 0.0
        %958 = vmatprep.subr.mxu0 0.0
        %959 = vmatpush2.msra.mxu0 0.0
        %960 = vmatprep.mubr.f32.mxu0 0.0
        %961 = vmatmul.mubr.f32.gmra.mxu0 %v817
        %v962 = vpop.f32.mrf.mxu0
        %v963 = vadd.f32 0.0, %v962
        %v964 = vpop.f32.mrf.mxu0
        %965 = vmatprep.mubr.f32.mxu0 0.0
        %966 = vmatmul.mubr.f32.gmra.mxu0 %v819
        %v967 = vpop.f32.mrf.mxu0
        %v968 = vadd.f32 0.0, %v967
        %v969 = vpop.f32.mrf.mxu0
        %970 = vmatprep.mubr.f32.mxu0 0.0
        %971 = vmatmul.mubr.f32.gmra.mxu0 %v821
        %v972 = vpop.f32.mrf.mxu0
        %v973 = vadd.f32 0.0, %v972
        %v974 = vpop.f32.mrf.mxu0
        %975 = vmatprep.mubr.f32.mxu0 0.0
        %976 = vmatmul.mubr.f32.gmra.mxu0 %v823
        %v977 = vpop.f32.mrf.mxu0
        %v978 = vadd.f32 0.0, %v977
        %v979 = vpop.f32.mrf.mxu0
        %980 = vmatprep.mubr.f32.mxu0 0.0
        %981 = vmatmul.mubr.f32.gmra.mxu0 %v825
        %v982 = vpop.f32.mrf.mxu0
        %v983 = vadd.f32 0.0, %v982
        %v984 = vpop.f32.mrf.mxu0
        %985 = vmatprep.mubr.f32.mxu0 0.0
        %986 = vmatmul.mubr.f32.gmra.mxu0 %v827
        %v987 = vpop.f32.mrf.mxu0
        %v988 = vadd.f32 0.0, %v987
        %v989 = vpop.f32.mrf.mxu0
        %990 = vmatprep.mubr.f32.mxu0 0.0
        %991 = vmatmul.mubr.f32.gmra.mxu0 %v829
        %v992 = vpop.f32.mrf.mxu0
        %v993 = vadd.f32 0.0, %v992
        %v994 = vpop.f32.mrf.mxu0
        %995 = vmatprep.mubr.f32.mxu0 0.0
        %996 = vmatmul.mubr.f32.gmra.mxu0 %v831
        %v997 = vpop.f32.mrf.mxu0
        %v998 = vadd.f32 0.0, %v997
        %v999 = vpop.f32.mrf.mxu0
        %1000 = vmatprep.mubr.f32.mxu0 0.0
        %1001 = vmatmul.mubr.f32.gmra.mxu0 %v833
        %v1002 = vpop.f32.mrf.mxu0
        %v1003 = vadd.f32 0.0, %v1002
        %v1004 = vpop.f32.mrf.mxu0
        %1005 = vmatprep.mubr.f32.mxu0 0.0
        %1006 = vmatmul.mubr.f32.gmra.mxu0 %v835
        %v1007 = vpop.f32.mrf.mxu0
        %v1008 = vadd.f32 0.0, %v1007
        %v1009 = vpop.f32.mrf.mxu0
        %1010 = vmatprep.mubr.f32.mxu0 0.0
        %1011 = vmatmul.mubr.f32.gmra.mxu0 %v837
        %v1012 = vpop.f32.mrf.mxu0
        %v1013 = vadd.f32 0.0, %v1012
        %v1014 = vpop.f32.mrf.mxu0
        %1015 = vmatprep.mubr.f32.mxu0 0.0
        %1016 = vmatmul.mubr.f32.gmra.mxu0 %v839
        %v1017 = vpop.f32.mrf.mxu0
        %v1018 = vadd.f32 0.0, %v1017
        %v1019 = vpop.f32.mrf.mxu0
        %1020 = vmatprep.mubr.f32.mxu0 0.0
        %1021 = vmatmul.mubr.f32.gmra.mxu0 %v841
        %v1022 = vpop.f32.mrf.mxu0
        %v1023 = vadd.f32 0.0, %v1022
        %v1024 = vpop.f32.mrf.mxu0
        %1025 = vmatprep.mubr.f32.mxu0 0.0
        %1026 = vmatmul.mubr.f32.gmra.mxu0 %v843
        %v1027 = vpop.f32.mrf.mxu0
        %v1028 = vadd.f32 0.0, %v1027
        %v1029 = vpop.f32.mrf.mxu0
        %1030 = vmatprep.mubr.f32.mxu0 0.0
        %1031 = vmatmul.mubr.f32.gmra.mxu0 %v845
        %v1032 = vpop.f32.mrf.mxu0
        %v1033 = vadd.f32 0.0, %v1032
        %v1034 = vpop.f32.mrf.mxu0
        %1035 = vmatprep.mubr.f32.mxu0 0.0
        %1036 = vmatmul.mubr.f32.gmra.mxu0 %v847
        %v1037 = vpop.f32.mrf.mxu0
        %v1038 = vadd.f32 0.0, %v1037
        %v1039 = vpop.f32.mrf.mxu0
        %1040 = vdwg.mxu0
        %v1041 = vrcp.pop %v849
        %v1042 = vrcp.pop %v851
        %v1043 = vrcp.pop %v853
        %v1044 = vrcp.pop %v855
        %v1045 = vrcp.pop %v857
        %v1046 = vrcp.pop %v859
        %v1047 = vrcp.pop %v861
        %v1048 = vrcp.pop %v863
        %v1049 = vrcp.pop %v865
        %v1050 = vrcp.pop %v867
        %v1051 = vrcp.pop %v869
        %v1052 = vrcp.pop %v871
        %v1053 = vrcp.pop %v873
        %v1054 = vrcp.pop %v875
        %v1055 = vrcp.pop %v877
        %v1056 = vrcp.pop %v879
        %v1057 = vmul.f32 %v963, %v1041
        %v1058 = vmul.f32 %v968, %v1042
        %v1059 = vmul.f32 %v973, %v1043
        %v1060 = vmul.f32 %v978, %v1044
        %v1061 = vmul.f32 %v983, %v1045
        %v1062 = vmul.f32 %v988, %v1046
        %v1063 = vmul.f32 %v993, %v1047
        %v1064 = vmul.f32 %v998, %v1048
        %v1065 = vmul.f32 %v1003, %v1049
        %v1066 = vmul.f32 %v1008, %v1050
        %v1067 = vmul.f32 %v1013, %v1051
        %v1068 = vmul.f32 %v1018, %v1052
        %v1069 = vmul.f32 %v1023, %v1053
        %v1070 = vmul.f32 %v1028, %v1054
        %v1071 = vmul.f32 %v1033, %v1055
        %v1072 = vmul.f32 %v1038, %v1056
        %v1073 = vld [vmem:[#allocation10] sm:$0xff]
        %v1074 = vld [vmem:[#allocation10 + $0x8] sm:$0xff]
        %v1075 = vld [vmem:[#allocation10 + $0x10] sm:$0xff]
        %v1076 = vld [vmem:[#allocation10 + $0x18] sm:$0xff]
        %v1077 = vld [vmem:[#allocation10 + $0x20] sm:$0xff]
        %v1078 = vld [vmem:[#allocation10 + $0x28] sm:$0xff]
        %v1079 = vld [vmem:[#allocation10 + $0x30] sm:$0xff]
        %v1080 = vld [vmem:[#allocation10 + $0x38] sm:$0xff]
        %v1081 = vld [vmem:[#allocation10 + $0x40] sm:$0xff]
        %v1082 = vld [vmem:[#allocation10 + $0x48] sm:$0xff]
        %v1083 = vld [vmem:[#allocation10 + $0x50] sm:$0xff]
        %v1084 = vld [vmem:[#allocation10 + $0x58] sm:$0xff]
        %v1085 = vld [vmem:[#allocation10 + $0x60] sm:$0xff]
        %v1086 = vld [vmem:[#allocation10 + $0x68] sm:$0xff]
        %v1087 = vld [vmem:[#allocation10 + $0x70] sm:$0xff]
        %v1088 = vld [vmem:[#allocation10 + $0x78] sm:$0xff]
        %v1089 = vld [vmem:[%s6] sm:$0x1]
        %v1091 = vlaneseq
        %v1092 = vshrl.u32 %v1091, 7
        %v1093 = vsub.s32 0, %v1092
        %v1094 = vrot.slane %v1089, %v1093
        %1096 = vmatprep.subr.mxu0 0.0
        %1097 = vmatpush1.msra.mxu0 %v1088
        %1098 = vmatprep.subr.mxu0 0.0
        %1099 = vmatpush1.msra.mxu0 %v1087
        %1100 = vmatprep.subr.mxu0 0.0
        %1101 = vmatpush1.msra.mxu0 %v1086
        %1102 = vmatprep.subr.mxu0 0.0
        %1103 = vmatpush1.msra.mxu0 %v1085
        %1104 = vmatprep.subr.mxu0 0.0
        %1105 = vmatpush1.msra.mxu0 %v1084
        %1106 = vmatprep.subr.mxu0 0.0
        %1107 = vmatpush1.msra.mxu0 %v1083
        %1108 = vmatprep.subr.mxu0 0.0
        %1109 = vmatpush1.msra.mxu0 %v1082
        %1110 = vmatprep.subr.mxu0 0.0
        %1111 = vmatpush1.msra.mxu0 %v1081
        %1112 = vmatprep.subr.mxu0 0.0
        %1113 = vmatpush1.msra.mxu0 %v1080
        %1114 = vmatprep.subr.mxu0 0.0
        %1115 = vmatpush1.msra.mxu0 %v1079
        %1116 = vmatprep.subr.mxu0 0.0
        %1117 = vmatpush1.msra.mxu0 %v1078
        %1118 = vmatprep.subr.mxu0 0.0
        %1119 = vmatpush1.msra.mxu0 %v1077
        %1120 = vmatprep.subr.mxu0 0.0
        %1121 = vmatpush1.msra.mxu0 %v1076
        %1122 = vmatprep.subr.mxu0 0.0
        %1123 = vmatpush1.msra.mxu0 %v1075
        %1124 = vmatprep.subr.mxu0 0.0
        %1125 = vmatpush1.msra.mxu0 %v1074
        %1126 = vmatprep.subr.mxu0 0.0
        %1127 = vmatpush1.msra.mxu0 %v1073
        %1128 = vmatprep.subr.mxu0 0.0
        %1129 = vmatpush2.msra.mxu0 0.0
        %1130 = vmatprep.subr.mxu0 0.0
        %1131 = vmatpush2.msra.mxu0 0.0
        %1132 = vmatprep.subr.mxu0 0.0
        %1133 = vmatpush2.msra.mxu0 0.0
        %1134 = vmatprep.subr.mxu0 0.0
        %1135 = vmatpush2.msra.mxu0 0.0
        %1136 = vmatprep.subr.mxu0 0.0
        %1137 = vmatpush2.msra.mxu0 0.0
        %1138 = vmatprep.subr.mxu0 0.0
        %1139 = vmatpush2.msra.mxu0 0.0
        %1140 = vmatprep.subr.mxu0 0.0
        %1141 = vmatpush2.msra.mxu0 0.0
        %1142 = vmatprep.subr.mxu0 0.0
        %1143 = vmatpush2.msra.mxu0 0.0
        %1144 = vmatprep.subr.mxu0 0.0
        %1145 = vmatpush2.msra.mxu0 0.0
        %1146 = vmatprep.subr.mxu0 0.0
        %1147 = vmatpush2.msra.mxu0 0.0
        %1148 = vmatprep.subr.mxu0 0.0
        %1149 = vmatpush2.msra.mxu0 0.0
        %1150 = vmatprep.subr.mxu0 0.0
        %1151 = vmatpush2.msra.mxu0 0.0
        %1152 = vmatprep.subr.mxu0 0.0
        %1153 = vmatpush2.msra.mxu0 0.0
        %1154 = vmatprep.subr.mxu0 0.0
        %1155 = vmatpush2.msra.mxu0 0.0
        %1156 = vmatprep.subr.mxu0 0.0
        %1157 = vmatpush2.msra.mxu0 0.0
        %1158 = vmatprep.subr.mxu0 0.0
        %1159 = vmatpush2.msra.mxu0 0.0
        %1160 = vmatprep.mubr.f32.mxu0 0.0
        %1161 = vmatmul.mubr.f32.gmra.mxu0 %v1057
        %v1162 = vpop.f32.mrf.mxu0
        %v1163 = vadd.f32 %v1094, %v1162
        %v1164 = vpop.f32.mrf.mxu0
        %1165 = vmatprep.mubr.f32.mxu0 0.0
        %1166 = vmatmul.mubr.f32.gmra.mxu0 %v1058
        %v1167 = vpop.f32.mrf.mxu0
        %v1168 = vadd.f32 %v1094, %v1167
        %v1169 = vpop.f32.mrf.mxu0
        %1170 = vmatprep.mubr.f32.mxu0 0.0
        %1171 = vmatmul.mubr.f32.gmra.mxu0 %v1059
        %v1172 = vpop.f32.mrf.mxu0
        %v1173 = vadd.f32 %v1094, %v1172
        %v1174 = vpop.f32.mrf.mxu0
        %1175 = vmatprep.mubr.f32.mxu0 0.0
        %1176 = vmatmul.mubr.f32.gmra.mxu0 %v1060
        %v1177 = vpop.f32.mrf.mxu0
        %v1178 = vadd.f32 %v1094, %v1177
        %v1179 = vpop.f32.mrf.mxu0
        %1180 = vmatprep.mubr.f32.mxu0 0.0
        %1181 = vmatmul.mubr.f32.gmra.mxu0 %v1061
        %v1182 = vpop.f32.mrf.mxu0
        %v1183 = vadd.f32 %v1094, %v1182
        %v1184 = vpop.f32.mrf.mxu0
        %1185 = vmatprep.mubr.f32.mxu0 0.0
        %1186 = vmatmul.mubr.f32.gmra.mxu0 %v1062
        %v1187 = vpop.f32.mrf.mxu0
        %v1188 = vadd.f32 %v1094, %v1187
        %v1189 = vpop.f32.mrf.mxu0
        %1190 = vmatprep.mubr.f32.mxu0 0.0
        %1191 = vmatmul.mubr.f32.gmra.mxu0 %v1063
        %v1192 = vpop.f32.mrf.mxu0
        %v1193 = vadd.f32 %v1094, %v1192
        %v1194 = vpop.f32.mrf.mxu0
        %1195 = vmatprep.mubr.f32.mxu0 0.0
        %1196 = vmatmul.mubr.f32.gmra.mxu0 %v1064
        %v1197 = vpop.f32.mrf.mxu0
        %v1198 = vadd.f32 %v1094, %v1197
        %v1199 = vpop.f32.mrf.mxu0
        %1200 = vmatprep.mubr.f32.mxu0 0.0
        %1201 = vmatmul.mubr.f32.gmra.mxu0 %v1065
        %v1202 = vpop.f32.mrf.mxu0
        %v1203 = vadd.f32 %v1094, %v1202
        %v1204 = vpop.f32.mrf.mxu0
        %1205 = vmatprep.mubr.f32.mxu0 0.0
        %1206 = vmatmul.mubr.f32.gmra.mxu0 %v1066
        %v1207 = vpop.f32.mrf.mxu0
        %v1208 = vadd.f32 %v1094, %v1207
        %v1209 = vpop.f32.mrf.mxu0
        %1210 = vmatprep.mubr.f32.mxu0 0.0
        %1211 = vmatmul.mubr.f32.gmra.mxu0 %v1067
        %v1212 = vpop.f32.mrf.mxu0
        %v1213 = vadd.f32 %v1094, %v1212
        %v1214 = vpop.f32.mrf.mxu0
        %1215 = vmatprep.mubr.f32.mxu0 0.0
        %1216 = vmatmul.mubr.f32.gmra.mxu0 %v1068
        %v1217 = vpop.f32.mrf.mxu0
        %v1218 = vadd.f32 %v1094, %v1217
        %v1219 = vpop.f32.mrf.mxu0
        %1220 = vmatprep.mubr.f32.mxu0 0.0
        %1221 = vmatmul.mubr.f32.gmra.mxu0 %v1069
        %v1222 = vpop.f32.mrf.mxu0
        %v1223 = vadd.f32 %v1094, %v1222
        %v1224 = vpop.f32.mrf.mxu0
        %1225 = vmatprep.mubr.f32.mxu0 0.0
        %1226 = vmatmul.mubr.f32.gmra.mxu0 %v1070
        %v1227 = vpop.f32.mrf.mxu0
        %v1228 = vadd.f32 %v1094, %v1227
        %v1229 = vpop.f32.mrf.mxu0
        %1230 = vmatprep.mubr.f32.mxu0 0.0
        %1231 = vmatmul.mubr.f32.gmra.mxu0 %v1071
        %v1232 = vpop.f32.mrf.mxu0
        %v1233 = vadd.f32 %v1094, %v1232
        %v1234 = vpop.f32.mrf.mxu0
        %1235 = vmatprep.mubr.f32.mxu0 0.0
        %1236 = vmatmul.mubr.f32.gmra.mxu0 %v1072
        %v1237 = vpop.f32.mrf.mxu0
        %v1238 = vadd.f32 %v1094, %v1237
        %v1239 = vpop.f32.mrf.mxu0
        %1240 = vdwg.mxu0
        %v1241 = vadd.f32 %v1163, %v423
        %v1242 = vadd.f32 %v1168, %v424
        %v1243 = vadd.f32 %v1173, %v425
        %v1244 = vadd.f32 %v1178, %v426
        %v1245 = vadd.f32 %v1183, %v427
        %v1246 = vadd.f32 %v1188, %v428
        %v1247 = vadd.f32 %v1193, %v429
        %v1248 = vadd.f32 %v1198, %v430
        %v1249 = vadd.f32 %v1203, %v431
        %v1250 = vadd.f32 %v1208, %v432
        %v1251 = vadd.f32 %v1213, %v433
        %v1252 = vadd.f32 %v1218, %v434
        %v1253 = vadd.f32 %v1223, %v435
        %v1254 = vadd.f32 %v1228, %v436
        %v1255 = vadd.f32 %v1233, %v437
        %v1256 = vadd.f32 %v1238, %v438
        %1257 = vst [vmem:[%s420] sm:$0xff] %v1241
        %1258 = vst [vmem:[%s420 + $0x8] sm:$0xff] %v1242
        %1259 = vst [vmem:[%s420 + $0x10] sm:$0xff] %v1243
        %1260 = vst [vmem:[%s420 + $0x18] sm:$0xff] %v1244
        %1261 = vst [vmem:[%s420 + $0x20] sm:$0xff] %v1245
        %1262 = vst [vmem:[%s420 + $0x28] sm:$0xff] %v1246
        %1263 = vst [vmem:[%s420 + $0x30] sm:$0xff] %v1247
        %1264 = vst [vmem:[%s420 + $0x38] sm:$0xff] %v1248
        %1265 = vst [vmem:[%s420 + $0x40] sm:$0xff] %v1249
        %1266 = vst [vmem:[%s420 + $0x48] sm:$0xff] %v1250
        %1267 = vst [vmem:[%s420 + $0x50] sm:$0xff] %v1251
        %1268 = vst [vmem:[%s420 + $0x58] sm:$0xff] %v1252
        %1269 = vst [vmem:[%s420 + $0x60] sm:$0xff] %v1253
        %1270 = vst [vmem:[%s420 + $0x68] sm:$0xff] %v1254
        %1271 = vst [vmem:[%s420 + $0x70] sm:$0xff] %v1255
        %1272 = vst [vmem:[%s420 + $0x78] sm:$0xff] %v1256
        %s1273 = sand.u32 %s214, 1
        %s1274 = scalar_lea.sflag [#allocation4], %s1273
        %s1275 = sand.u32 %s214, 1
        %s1276 = smul.addr %s1275, 128
        %s1277 = scalar_lea.vmem [#allocation11], %s1276
        // Predicated region
        $region69: #{tpu_custom_call.1} parent=47 // pred_check
          %p1278 = pneg %p224
        $region70: #{tpu_custom_call.1} parent=47 // pred_check_branch
          %1280 = sbr.rel (%p1278) target = $region72
        $region71: #{tpu_custom_call.1} parent=47 // pred_region
          %s1281 = smul.u32 16, %s33
          %s1283 = ssub.s32 2048, 2048
          %1284 = vsyncadd %s1274, %s1283
          %s1285 = smul.addr %s32, 64
          %s1286 = sadd.s32 %s1281, %s1285
          %s1287 = smul.addr %s1286, 128
          %s1288 = scalar_lea.hbm %s7, %s1287
          %s1289 = sshll.u32 %s1277, 4
          %s1290 = int_to_ptr.vmem [resolvable:$true] %s1289
          %1295 = dma.vmem_to_hbm [thread:$0]  %s1290, 2048, %s1288, %s1274, 128, 128, 8
        $region72: #{tpu_custom_call.1} parent=47 // pred_fallthru
          _
      $region48: #{tpu_custom_call.1} parent=5 // pred_fallthru
        _
      %p1296 = scmp.le.s32.totalorder 2, %s23
      // Predicated region
      $region73: #{tpu_custom_call.1} parent=5 // pred_check
        %p1297 = pneg %p1296
      $region74: #{tpu_custom_call.1} parent=5 // pred_check_branch
        %1299 = sbr.rel (%p1297) target = $region76
      $region75: #{tpu_custom_call.1} parent=5 // pred_region
        %s1300 = ssub.s32 %s23, 2
        // Predicated region
        $region77: #{tpu_custom_call.1} parent=75 // pred_check
          %p1301 = pneg %p230
        $region78: #{tpu_custom_call.1} parent=75 // pred_check_branch
          %1303 = sbr.rel (%p1301) target = $region80
        $region79: #{tpu_custom_call.1} parent=75 // pred_region
          %s1304 = sand.u32 %s215, 1
          %s1305 = scalar_lea.sflag [#allocation4], %s1304
          %s1306 = sand.u32 %s215, 1
          %s1307 = smul.addr %s1306, 128
          %s1308 = scalar_lea.vmem [#allocation11], %s1307
          %1309 = dma.done %s1305, 2048
        $region80: #{tpu_custom_call.1} parent=75 // pred_fallthru
          _
      $region76: #{tpu_custom_call.1} parent=5 // pred_fallthru
        _
    $region6: #{tpu_custom_call.1} parent=1 // loop_footer
      %s27 = sadd.s32 1, %s23
    $region7: #{tpu_custom_call.1} parent=1 // loop_footer_branch
      %22 = sbr.rel target = $region3
    $region8: #{tpu_custom_call.1} parent=1 // loop_exit
      _
    %1310 = vsyncpa [#allocation3], 1
    %s1311 = scalar_lea.sflag [#allocation3], 1
    %1312 = vsyncpa %s1311, 1
    %1313 = vsyncpa [#allocation6], 1
    %s1314 = scalar_lea.sflag [#allocation6], 1
    %1315 = vsyncpa %s1314, 1
    %1316 = vsyncpa [#allocation9], 1
    %1317 = vsyncpa [#allocation4], 1
    %s1318 = scalar_lea.sflag [#allocation4], 1
    %1319 = vsyncpa %s1318, 1

</llo_original>
